<compile_context>
chip_gen: v7x
topology: tpu7x:2x2x1
jax: 0.10.0
libtpu: 0.0.40
codegen_flags: <defaults>
</compile_context>

<pallas_src>
import functools

import jax
import jax.numpy as jnp
from jax.experimental import pallas as pl
from jax.experimental.pallas import tpu as pltpu


def _attention_kernel(x_ref, wqkv_ref, bqkv_ref, wproj_ref, bproj_ref,
                      o_ref, qkv_ref, ctx_ref, *,
                      scale, n_heads, head_dim, n_valid, block_q, add_qkv_bias):
    """Fused attention for one (batch, q-tile) grid point.

    x_ref     : (1, N_pad, D)   activations (compute dtype)
    wqkv_ref  : (D, 3D)         fused qkv weight, already transposed (compute dtype)
    bqkv_ref  : (1, 3D)         qkv bias (f32, zeros if module has qkv_bias=False)
    wproj_ref : (D, D)          output projection weight, transposed (compute dtype)
    bproj_ref : (1, D)          output projection bias (f32)
    o_ref     : (1, block_q, D) output tile
    qkv_ref   : (N_pad, 3D)     VMEM scratch (compute dtype)
    ctx_ref   : (block_q, D)    VMEM scratch (compute dtype)
    """
    dims = n_heads * head_dim
    n_pad = x_ref.shape[1]

    # --- 1) Fused QKV projection: one lane-dense MXU matmul, f32 accumulation.
    qkv = jnp.dot(x_ref[0], wqkv_ref[...], preferred_element_type=jnp.float32)
    if add_qkv_bias:
        qkv = qkv + bqkv_ref[...]
    qkv_ref[...] = qkv.astype(qkv_ref.dtype)

    q_start = pl.multiple_of(pl.program_id(1) * block_q, block_q)

    # Key-padding mask (only when the wrapper padded the token axis).
    masked = n_pad > n_valid
    if masked:
        col = jax.lax.broadcasted_iota(jnp.int32, (block_q, n_pad), 1)
        key_mask = col < n_valid

    # --- 2) Per-head attention; context slabs written head-major into ctx scratch.
    for h in range(n_heads):
        q_h = qkv_ref[pl.ds(q_start, block_q), pl.ds(h * head_dim, head_dim)]
        k_h = qkv_ref[:, pl.ds(dims + h * head_dim, head_dim)]
        v_h = qkv_ref[:, pl.ds(2 * dims + h * head_dim, head_dim)]

        # q @ k^T without materializing a transpose: contract last dims of both.
        s = jax.lax.dot_general(
            q_h, k_h, (((1,), (1,)), ((), ())),
            preferred_element_type=jnp.float32) * scale          # (block_q, N_pad) f32
        if masked:
            s = jnp.where(key_mask, s, -1e30)

        # Numerically stable softmax in f32 (v5e has no bf16 VPU/EUP path).
        s = s - jnp.max(s, axis=-1, keepdims=True)
        p = jnp.exp(s)
        p = p * pl.reciprocal(jnp.sum(p, axis=-1, keepdims=True), approx=True)

        ctx_h = jnp.dot(p.astype(v_h.dtype), v_h,
                        preferred_element_type=jnp.float32)      # (block_q, head_dim)
        ctx_ref[:, pl.ds(h * head_dim, head_dim)] = ctx_h.astype(ctx_ref.dtype)

    # --- 3) Single output projection over all heads (contraction K = D) + bias.
    out = jnp.dot(ctx_ref[...], wproj_ref[...], preferred_element_type=jnp.float32)
    out = out + bproj_ref[...]
    o_ref[0] = out.astype(o_ref.dtype)


def _round_up(a, m):
    return (a + m - 1) // m * m


def attention_forward(x, w_qkv, b_qkv, w_proj, b_proj, *, n_heads,
                      block_q=None, compute_dtype=None):
    """Pallas wrapper reproducing Attention.forward (eval mode).

    x      : (B, N, D)
    w_qkv  : (3D, D)   PyTorch Linear weight layout (out_features, in_features)
    b_qkv  : (3D,) or None
    w_proj : (D, D)
    b_proj : (D,)
    compute_dtype : dtype for MXU operands (e.g. jnp.bfloat16); accumulation is f32.
    """
    B, N, D = x.shape
    head_dim = D // n_heads
    scale = head_dim ** (-0.5)
    out_dtype = x.dtype
    compute_dtype = compute_dtype or x.dtype

    # Choose a q-tile size and pad the token axis so blocks are sublane-aligned.
    if block_q is None:
        block_q = _round_up(N, 8) if N <= 1024 else 256
    block_q = _round_up(block_q, 8)
    n_pad = _round_up(N, block_q)
    nq = n_pad // block_q

    if n_pad != N:
        x = jnp.pad(x, ((0, 0), (0, n_pad - N), (0, 0)))

    # Glue: transpose weights once in the wrapper (so the kernel does x @ W^T),
    # cast MXU operands to the compute dtype, keep biases in f32.
    x_c = x.astype(compute_dtype)
    wqkv_t = w_qkv.T.astype(compute_dtype)                         # (D, 3D)
    wproj_t = w_proj.T.astype(compute_dtype)                       # (D, D)
    add_qkv_bias = b_qkv is not None
    bqkv = (b_qkv if add_qkv_bias else jnp.zeros((3 * D,), jnp.float32))
    bqkv = bqkv.astype(jnp.float32).reshape(1, 3 * D)
    bproj = b_proj.astype(jnp.float32).reshape(1, D)

    kernel = functools.partial(
        _attention_kernel, scale=scale, n_heads=n_heads, head_dim=head_dim,
        n_valid=N, block_q=block_q, add_qkv_bias=add_qkv_bias)

    itemsize = jnp.dtype(compute_dtype).itemsize
    flops = (2 * B * nq * n_pad * D * 3 * D        # fused qkv (recomputed per q-tile)
             + 4 * B * n_pad * n_pad * D           # q@k^T and attn@v over all heads
             + 2 * B * n_pad * D * D)              # output projection
    transcendentals = B * n_heads * n_pad * n_pad  # exp in softmax
    bytes_accessed = (B * n_pad * D * itemsize                     # x
                      + (3 * D * D + D * D) * itemsize             # weights (resident)
                      + 4 * (3 * D + D)                            # biases
                      + B * n_pad * D * jnp.dtype(out_dtype).itemsize)  # out

    out = pl.pallas_call(
        kernel,
        out_shape=jax.ShapeDtypeStruct((B, n_pad, D), out_dtype),
        grid_spec=pltpu.PrefetchScalarGridSpec(
            num_scalar_prefetch=0,
            grid=(B, nq),
            in_specs=[
                # Full token sequence per batch element (revisited across q-tiles).
                pl.BlockSpec((1, n_pad, D), lambda b, qi: (b, 0, 0)),
                # Weights / biases: constant block index -> fetched once, VMEM-resident.
                pl.BlockSpec((D, 3 * D), lambda b, qi: (0, 0)),
                pl.BlockSpec((1, 3 * D), lambda b, qi: (0, 0)),
                pl.BlockSpec((D, D), lambda b, qi: (0, 0)),
                pl.BlockSpec((1, D), lambda b, qi: (0, 0)),
            ],
            out_specs=pl.BlockSpec((1, block_q, D), lambda b, qi: (b, qi, 0)),
            scratch_shapes=[
                pltpu.VMEM((n_pad, 3 * D), compute_dtype),   # fused qkv
                pltpu.VMEM((block_q, D), compute_dtype),     # concatenated context
            ],
        ),
        compiler_params=pltpu.CompilerParams(
            dimension_semantics=("parallel", "parallel"),
            vmem_limit_bytes=64 * 1024 * 1024),
        cost_estimate=pl.CostEstimate(
            flops=flops, transcendentals=transcendentals,
            bytes_accessed=bytes_accessed),
    )(x_c, wqkv_t, bqkv, wproj_t, bproj)

    return out[:, :N, :]


def attention_reference(x, w_qkv, b_qkv, w_proj, b_proj, *, n_heads):
    """Pure-JAX reference mirroring the PyTorch forward (eval mode)."""
    B, N, D = x.shape
    hd = D // n_heads
    scale = hd ** (-0.5)
    qkv = jnp.einsum("bnd,od->bno", x, w_qkv)
    if b_qkv is not None:
        qkv = qkv + b_qkv
    qkv = qkv.reshape(B, N, 3, n_heads, hd).transpose(2, 0, 3, 1, 4)
    q, k, v = qkv[0], qkv[1], qkv[2]
    s = jnp.einsum("bhqd,bhkd->bhqk", q, k) * scale
    attn = jax.nn.softmax(s, axis=-1)
    ctx = jnp.einsum("bhqk,bhkd->bhqd", attn, v)
    ctx = ctx.transpose(0, 2, 1, 3).reshape(B, N, D)
    return jnp.einsum("bnd,od->bno", ctx, w_proj) + b_proj


if __name__ == "__main__":
    # Small shapes consistent with the module: (n_samples, n_tokens, dims)
    B, N, D, H = 2, 8, 32, 4

    key = jax.random.PRNGKey(0)
    kx, kw1, kb1, kw2, kb2 = jax.random.split(key, 5)

    x = jax.random.normal(kx, (B, N, D), dtype=jnp.float32)
    w_qkv = jax.random.normal(kw1, (3 * D, D), dtype=jnp.float32) * 0.05
    b_qkv = None                       # module default qkv_bias=False
    w_proj = jax.random.normal(kw2, (D, D), dtype=jnp.float32) * 0.05
    b_proj = jax.random.normal(kb2, (D,), dtype=jnp.float32) * 0.05

    # 1) f32 path, no padding, single q-tile.
    out = jax.block_until_ready(
        attention_forward(x, w_qkv, b_qkv, w_proj, b_proj, n_heads=H))
    ref = attention_reference(x, w_qkv, b_qkv, w_proj, b_proj, n_heads=H)
    assert out.shape == (B, N, D)
    assert jnp.allclose(out, ref, atol=2e-3, rtol=2e-3), "f32 mismatch vs reference"

    # 2) padded-token / multi-q-tile / qkv_bias path (f32).
    N2 = 10
    x2 = jax.random.normal(kx, (B, N2, D), dtype=jnp.float32)
    b_qkv2 = jax.random.normal(kb1, (3 * D,), dtype=jnp.float32) * 0.05
    out2 = jax.block_until_ready(
        attention_forward(x2, w_qkv, b_qkv2, w_proj, b_proj, n_heads=H, block_q=8))
    ref2 = attention_reference(x2, w_qkv, b_qkv2, w_proj, b_proj, n_heads=H)
    assert out2.shape == (B, N2, D)
    assert jnp.allclose(out2, ref2, atol=2e-3, rtol=2e-3), "padded-path mismatch"

    # 3) bf16 MXU operands with f32 accumulation (looser tolerance vs f32 reference).
    out3 = jax.block_until_ready(
        attention_forward(x, w_qkv, b_qkv, w_proj, b_proj, n_heads=H,
                          compute_dtype=jnp.bfloat16))
    assert float(jnp.max(jnp.abs(out3.astype(jnp.float32) - ref))) < 5e-2, \
        "bf16 path drifted too far from f32 reference"

    print("KERNEL_OK")
</pallas_src>

<mosaic_0001>
module attributes {stable_mosaic.version = 11 : i64} {
  func.func @_attention_kernel(%arg0: i32, %arg1: i32, %arg2: memref<1x8x32xf32, #tpu.memory_space<vmem>>, %arg3: memref<32x96xf32, #tpu.memory_space<vmem>>, %arg4: memref<1x96xf32, #tpu.memory_space<vmem>>, %arg5: memref<32x32xf32, #tpu.memory_space<vmem>>, %arg6: memref<1x32xf32, #tpu.memory_space<vmem>>, %arg7: memref<1x8x32xf32, #tpu.memory_space<vmem>>, %arg8: memref<8x96xf32, #tpu.memory_space<vmem>>, %arg9: memref<8x32xf32, #tpu.memory_space<vmem>>) attributes {dimension_semantics = [#tpu.dimension_semantics<parallel>, #tpu.dimension_semantics<parallel>], iteration_bounds = array<i64: 2, 1>, scalar_prefetch = 0 : i64, scratch_operands = 2 : i64, tpu.core_type = #tpu.core_type<tc>, window_params = [{transform_indices = @transform_0, window_bounds = array<i64: 1, 8, 32>}, {pipeline_mode = #tpu.pipeline_mode<synchronous>, transform_indices = @transform_1, window_bounds = array<i64: 32, 96>}, {pipeline_mode = #tpu.pipeline_mode<synchronous>, transform_indices = @transform_2, window_bounds = array<i64: 1, 96>}, {pipeline_mode = #tpu.pipeline_mode<synchronous>, transform_indices = @transform_3, window_bounds = array<i64: 32, 32>}, {pipeline_mode = #tpu.pipeline_mode<synchronous>, transform_indices = @transform_4, window_bounds = array<i64: 1, 32>}, {transform_indices = @transform_5, window_bounds = array<i64: 1, 8, 32>}]} {
    %c0 = arith.constant 0 : index
    %c0_0 = arith.constant 0 : index
    %c0_1 = arith.constant 0 : index
    %0 = vector.load %arg2[%c0, %c0_0, %c0_1] : memref<1x8x32xf32, #tpu.memory_space<vmem>>, vector<1x8x32xf32>
    %1 = vector.shape_cast %0 : vector<1x8x32xf32> to vector<8x32xf32>
    %c0_2 = arith.constant 0 : index
    %c0_3 = arith.constant 0 : index
    %2 = vector.load %arg3[%c0_2, %c0_3] : memref<32x96xf32, #tpu.memory_space<vmem>>, vector<32x96xf32>
    %cst = arith.constant dense<0.000000e+00> : vector<8x96xf32>
    %3 = tpu.matmul %1, %2, %cst {dimension_numbers = #tpu.dot_dimension_numbers<[1], [0], [0], [1], [0, 0, 1, 1], [], []>} : vector<8x32xf32>, vector<32x96xf32>, vector<8x96xf32> -> vector<8x96xf32>
    %c0_4 = arith.constant 0 : index
    %c0_5 = arith.constant 0 : index
    %4 = vector.load %arg8[%c0_4, %c0_5] : memref<8x96xf32, #tpu.memory_space<vmem>>, vector<8x96xf32>
    tpu.vector_store %arg8[%c0_4, %c0_5], %3 {strides = array<i32>} : memref<8x96xf32, #tpu.memory_space<vmem>>, vector<8x96xf32>,
    %c8_i32 = arith.constant 8 : i32
    %5 = arith.muli %arg1, %c8_i32 : i32
    %6 = tpu.assume_multiple %5, 8 : i32
    %7 = arith.index_cast %6 : i32 to index
    %c0_6 = arith.constant 0 : index
    %8 = vector.load %arg8[%7, %c0_6] : memref<8x96xf32, #tpu.memory_space<vmem>>, vector<8x8xf32>
    %c0_7 = arith.constant 0 : index
    %c32 = arith.constant 32 : index
    %9 = vector.load %arg8[%c0_7, %c32] : memref<8x96xf32, #tpu.memory_space<vmem>>, vector<8x8xf32>
    %c0_8 = arith.constant 0 : index
    %c64 = arith.constant 64 : index
    %10 = vector.load %arg8[%c0_8, %c64] : memref<8x96xf32, #tpu.memory_space<vmem>>, vector<8x8xf32>
    %cst_9 = arith.constant dense<0.000000e+00> : vector<8x8xf32>
    %11 = tpu.matmul %8, %9, %cst_9 {dimension_numbers = #tpu.dot_dimension_numbers<[1], [1], [0], [0], [0, 0, 1, 0], [], []>} : vector<8x8xf32>, vector<8x8xf32>, vector<8x8xf32> -> vector<8x8xf32>
    %cst_10 = arith.constant 0.353553385 : f32
    %12 = vector.broadcast %cst_10 : f32 to vector<8x8xf32>
    %13 = arith.mulf %11, %12 : vector<8x8xf32>
    %cst_11 = arith.constant dense<0xFF800000> : vector<8xf32>
    %14 = vector.multi_reduction <maximumf>, %13, %cst_11 [1] : vector<8x8xf32> to vector<8xf32>
    %15 = vector.shape_cast %14 : vector<8xf32> to vector<8x1xf32>
    %16 = vector.broadcast %15 : vector<8x1xf32> to vector<8x8xf32>
    %17 = arith.subf %13, %16 : vector<8x8xf32>
    %18 = math.exp %17 : vector<8x8xf32>
    %cst_12 = arith.constant dense<0.000000e+00> : vector<8xf32>
    %19 = vector.multi_reduction <add>, %18, %cst_12 [1] : vector<8x8xf32> to vector<8xf32>
    %20 = vector.shape_cast %19 : vector<8xf32> to vector<8x1xf32>
    %21 = tpu.reciprocal %20 {approx = true} : vector<8x1xf32> -> vector<8x1xf32>
    %22 = vector.broadcast %21 : vector<8x1xf32> to vector<8x8xf32>
    %23 = arith.mulf %18, %22 : vector<8x8xf32>
    %cst_13 = arith.constant dense<0.000000e+00> : vector<8x8xf32>
    %24 = tpu.matmul %23, %10, %cst_13 {dimension_numbers = #tpu.dot_dimension_numbers<[1], [0], [0], [1], [0, 0, 1, 1], [], []>} : vector<8x8xf32>, vector<8x8xf32>, vector<8x8xf32> -> vector<8x8xf32>
    %c0_14 = arith.constant 0 : index
    %c0_15 = arith.constant 0 : index
    %25 = vector.load %arg9[%c0_14, %c0_15] : memref<8x32xf32, #tpu.memory_space<vmem>>, vector<8x8xf32>
    tpu.vector_store %arg9[%c0_14, %c0_15], %24 {strides = array<i32>} : memref<8x32xf32, #tpu.memory_space<vmem>>, vector<8x8xf32>,
    %26 = arith.index_cast %6 : i32 to index
    %c8 = arith.constant 8 : index
    %27 = vector.load %arg8[%26, %c8] : memref<8x96xf32, #tpu.memory_space<vmem>>, vector<8x8xf32>
    %c0_16 = arith.constant 0 : index
    %c40 = arith.constant 40 : index
    %28 = vector.load %arg8[%c0_16, %c40] : memref<8x96xf32, #tpu.memory_space<vmem>>, vector<8x8xf32>
    %c0_17 = arith.constant 0 : index
    %c72 = arith.constant 72 : index
    %29 = vector.load %arg8[%c0_17, %c72] : memref<8x96xf32, #tpu.memory_space<vmem>>, vector<8x8xf32>
    %cst_18 = arith.constant dense<0.000000e+00> : vector<8x8xf32>
    %30 = tpu.matmul %27, %28, %cst_18 {dimension_numbers = #tpu.dot_dimension_numbers<[1], [1], [0], [0], [0, 0, 1, 0], [], []>} : vector<8x8xf32>, vector<8x8xf32>, vector<8x8xf32> -> vector<8x8xf32>
    %cst_19 = arith.constant 0.353553385 : f32
    %31 = vector.broadcast %cst_19 : f32 to vector<8x8xf32>
    %32 = arith.mulf %30, %31 : vector<8x8xf32>
    %cst_20 = arith.constant dense<0xFF800000> : vector<8xf32>
    %33 = vector.multi_reduction <maximumf>, %32, %cst_20 [1] : vector<8x8xf32> to vector<8xf32>
    %34 = vector.shape_cast %33 : vector<8xf32> to vector<8x1xf32>
    %35 = vector.broadcast %34 : vector<8x1xf32> to vector<8x8xf32>
    %36 = arith.subf %32, %35 : vector<8x8xf32>
    %37 = math.exp %36 : vector<8x8xf32>
    %cst_21 = arith.constant dense<0.000000e+00> : vector<8xf32>
    %38 = vector.multi_reduction <add>, %37, %cst_21 [1] : vector<8x8xf32> to vector<8xf32>
    %39 = vector.shape_cast %38 : vector<8xf32> to vector<8x1xf32>
    %40 = tpu.reciprocal %39 {approx = true} : vector<8x1xf32> -> vector<8x1xf32>
    %41 = vector.broadcast %40 : vector<8x1xf32> to vector<8x8xf32>
    %42 = arith.mulf %37, %41 : vector<8x8xf32>
    %cst_22 = arith.constant dense<0.000000e+00> : vector<8x8xf32>
    %43 = tpu.matmul %42, %29, %cst_22 {dimension_numbers = #tpu.dot_dimension_numbers<[1], [0], [0], [1], [0, 0, 1, 1], [], []>} : vector<8x8xf32>, vector<8x8xf32>, vector<8x8xf32> -> vector<8x8xf32>
    %c0_23 = arith.constant 0 : index
    %c8_24 = arith.constant 8 : index
    %44 = vector.load %arg9[%c0_23, %c8_24] : memref<8x32xf32, #tpu.memory_space<vmem>>, vector<8x8xf32>
    tpu.vector_store %arg9[%c0_23, %c8_24], %43 {strides = array<i32>} : memref<8x32xf32, #tpu.memory_space<vmem>>, vector<8x8xf32>,
    %45 = arith.index_cast %6 : i32 to index
    %c16 = arith.constant 16 : index
    %46 = vector.load %arg8[%45, %c16] : memref<8x96xf32, #tpu.memory_space<vmem>>, vector<8x8xf32>
    %c0_25 = arith.constant 0 : index
    %c48 = arith.constant 48 : index
    %47 = vector.load %arg8[%c0_25, %c48] : memref<8x96xf32, #tpu.memory_space<vmem>>, vector<8x8xf32>
    %c0_26 = arith.constant 0 : index
    %c80 = arith.constant 80 : index
    %48 = vector.load %arg8[%c0_26, %c80] : memref<8x96xf32, #tpu.memory_space<vmem>>, vector<8x8xf32>
    %cst_27 = arith.constant dense<0.000000e+00> : vector<8x8xf32>
    %49 = tpu.matmul %46, %47, %cst_27 {dimension_numbers = #tpu.dot_dimension_numbers<[1], [1], [0], [0], [0, 0, 1, 0], [], []>} : vector<8x8xf32>, vector<8x8xf32>, vector<8x8xf32> -> vector<8x8xf32>
    %cst_28 = arith.constant 0.353553385 : f32
    %50 = vector.broadcast %cst_28 : f32 to vector<8x8xf32>
    %51 = arith.mulf %49, %50 : vector<8x8xf32>
    %cst_29 = arith.constant dense<0xFF800000> : vector<8xf32>
    %52 = vector.multi_reduction <maximumf>, %51, %cst_29 [1] : vector<8x8xf32> to vector<8xf32>
    %53 = vector.shape_cast %52 : vector<8xf32> to vector<8x1xf32>
    %54 = vector.broadcast %53 : vector<8x1xf32> to vector<8x8xf32>
    %55 = arith.subf %51, %54 : vector<8x8xf32>
    %56 = math.exp %55 : vector<8x8xf32>
    %cst_30 = arith.constant dense<0.000000e+00> : vector<8xf32>
    %57 = vector.multi_reduction <add>, %56, %cst_30 [1] : vector<8x8xf32> to vector<8xf32>
    %58 = vector.shape_cast %57 : vector<8xf32> to vector<8x1xf32>
    %59 = tpu.reciprocal %58 {approx = true} : vector<8x1xf32> -> vector<8x1xf32>
    %60 = vector.broadcast %59 : vector<8x1xf32> to vector<8x8xf32>
    %61 = arith.mulf %56, %60 : vector<8x8xf32>
    %cst_31 = arith.constant dense<0.000000e+00> : vector<8x8xf32>
    %62 = tpu.matmul %61, %48, %cst_31 {dimension_numbers = #tpu.dot_dimension_numbers<[1], [0], [0], [1], [0, 0, 1, 1], [], []>} : vector<8x8xf32>, vector<8x8xf32>, vector<8x8xf32> -> vector<8x8xf32>
    %c0_32 = arith.constant 0 : index
    %c16_33 = arith.constant 16 : index
    %63 = vector.load %arg9[%c0_32, %c16_33] : memref<8x32xf32, #tpu.memory_space<vmem>>, vector<8x8xf32>
    tpu.vector_store %arg9[%c0_32, %c16_33], %62 {strides = array<i32>} : memref<8x32xf32, #tpu.memory_space<vmem>>, vector<8x8xf32>,
    %64 = arith.index_cast %6 : i32 to index
    %c24 = arith.constant 24 : index
    %65 = vector.load %arg8[%64, %c24] : memref<8x96xf32, #tpu.memory_space<vmem>>, vector<8x8xf32>
    %c0_34 = arith.constant 0 : index
    %c56 = arith.constant 56 : index
    %66 = vector.load %arg8[%c0_34, %c56] : memref<8x96xf32, #tpu.memory_space<vmem>>, vector<8x8xf32>
    %c0_35 = arith.constant 0 : index
    %c88 = arith.constant 88 : index
    %67 = vector.load %arg8[%c0_35, %c88] : memref<8x96xf32, #tpu.memory_space<vmem>>, vector<8x8xf32>
    %cst_36 = arith.constant dense<0.000000e+00> : vector<8x8xf32>
    %68 = tpu.matmul %65, %66, %cst_36 {dimension_numbers = #tpu.dot_dimension_numbers<[1], [1], [0], [0], [0, 0, 1, 0], [], []>} : vector<8x8xf32>, vector<8x8xf32>, vector<8x8xf32> -> vector<8x8xf32>
    %cst_37 = arith.constant 0.353553385 : f32
    %69 = vector.broadcast %cst_37 : f32 to vector<8x8xf32>
    %70 = arith.mulf %68, %69 : vector<8x8xf32>
    %cst_38 = arith.constant dense<0xFF800000> : vector<8xf32>
    %71 = vector.multi_reduction <maximumf>, %70, %cst_38 [1] : vector<8x8xf32> to vector<8xf32>
    %72 = vector.shape_cast %71 : vector<8xf32> to vector<8x1xf32>
    %73 = vector.broadcast %72 : vector<8x1xf32> to vector<8x8xf32>
    %74 = arith.subf %70, %73 : vector<8x8xf32>
    %75 = math.exp %74 : vector<8x8xf32>
    %cst_39 = arith.constant dense<0.000000e+00> : vector<8xf32>
    %76 = vector.multi_reduction <add>, %75, %cst_39 [1] : vector<8x8xf32> to vector<8xf32>
    %77 = vector.shape_cast %76 : vector<8xf32> to vector<8x1xf32>
    %78 = tpu.reciprocal %77 {approx = true} : vector<8x1xf32> -> vector<8x1xf32>
    %79 = vector.broadcast %78 : vector<8x1xf32> to vector<8x8xf32>
    %80 = arith.mulf %75, %79 : vector<8x8xf32>
    %cst_40 = arith.constant dense<0.000000e+00> : vector<8x8xf32>
    %81 = tpu.matmul %80, %67, %cst_40 {dimension_numbers = #tpu.dot_dimension_numbers<[1], [0], [0], [1], [0, 0, 1, 1], [], []>} : vector<8x8xf32>, vector<8x8xf32>, vector<8x8xf32> -> vector<8x8xf32>
    %c0_41 = arith.constant 0 : index
    %c24_42 = arith.constant 24 : index
    %82 = vector.load %arg9[%c0_41, %c24_42] : memref<8x32xf32, #tpu.memory_space<vmem>>, vector<8x8xf32>
    tpu.vector_store %arg9[%c0_41, %c24_42], %81 {strides = array<i32>} : memref<8x32xf32, #tpu.memory_space<vmem>>, vector<8x8xf32>,
    %c0_43 = arith.constant 0 : index
    %c0_44 = arith.constant 0 : index
    %83 = vector.load %arg9[%c0_43, %c0_44] : memref<8x32xf32, #tpu.memory_space<vmem>>, vector<8x32xf32>
    %c0_45 = arith.constant 0 : index
    %c0_46 = arith.constant 0 : index
    %84 = vector.load %arg5[%c0_45, %c0_46] : memref<32x32xf32, #tpu.memory_space<vmem>>, vector<32x32xf32>
    %cst_47 = arith.constant dense<0.000000e+00> : vector<8x32xf32>
    %85 = tpu.matmul %83, %84, %cst_47 {dimension_numbers = #tpu.dot_dimension_numbers<[1], [0], [0], [1], [0, 0, 1, 1], [], []>} : vector<8x32xf32>, vector<32x32xf32>, vector<8x32xf32> -> vector<8x32xf32>
    %c0_48 = arith.constant 0 : index
    %c0_49 = arith.constant 0 : index
    %86 = vector.load %arg6[%c0_48, %c0_49] : memref<1x32xf32, #tpu.memory_space<vmem>>, vector<1x32xf32>
    %87 = vector.broadcast %86 : vector<1x32xf32> to vector<8x32xf32>
    %88 = arith.addf %85, %87 : vector<8x32xf32>
    %c0_50 = arith.constant 0 : index
    %c0_51 = arith.constant 0 : index
    %c0_52 = arith.constant 0 : index
    %89 = vector.load %arg7[%c0_50, %c0_51, %c0_52] : memref<1x8x32xf32, #tpu.memory_space<vmem>>, vector<1x8x32xf32>
    %90 = vector.shape_cast %89 : vector<1x8x32xf32> to vector<8x32xf32>
    %91 = vector.shape_cast %88 : vector<8x32xf32> to vector<1x8x32xf32>
    tpu.vector_store %arg7[%c0_50, %c0_51, %c0_52], %91 {strides = array<i32>} : memref<1x8x32xf32, #tpu.memory_space<vmem>>, vector<1x8x32xf32>,
    return
  }
  func.func @transform_0(%arg0: i32, %arg1: i32) -> (i32, i32, i32) {
    %c0_i32 = arith.constant 0 : i32
    %c0_i32_0 = arith.constant 0 : i32
    %c0_i32_1 = arith.constant 0 : i32
    return %arg0, %c0_i32, %c0_i32_0 : i32, i32, i32
  }
  func.func @transform_1(%arg0: i32, %arg1: i32) -> (i32, i32) {
    %c0_i32 = arith.constant 0 : i32
    %c0_i32_0 = arith.constant 0 : i32
    %c0_i32_1 = arith.constant 0 : i32
    return %c0_i32, %c0_i32_0 : i32, i32
  }
  func.func @transform_2(%arg0: i32, %arg1: i32) -> (i32, i32) {
    %c0_i32 = arith.constant 0 : i32
    %c0_i32_0 = arith.constant 0 : i32
    %c0_i32_1 = arith.constant 0 : i32
    return %c0_i32, %c0_i32_0 : i32, i32
  }
  func.func @transform_3(%arg0: i32, %arg1: i32) -> (i32, i32) {
    %c0_i32 = arith.constant 0 : i32
    %c0_i32_0 = arith.constant 0 : i32
    %c0_i32_1 = arith.constant 0 : i32
    return %c0_i32, %c0_i32_0 : i32, i32
  }
  func.func @transform_4(%arg0: i32, %arg1: i32) -> (i32, i32) {
    %c0_i32 = arith.constant 0 : i32
    %c0_i32_0 = arith.constant 0 : i32
    %c0_i32_1 = arith.constant 0 : i32
    return %c0_i32, %c0_i32_0 : i32, i32
  }
  func.func @transform_5(%arg0: i32, %arg1: i32) -> (i32, i32, i32) {
    %c0_i32 = arith.constant 0 : i32
    %c0_i32_0 = arith.constant 0 : i32
    return %arg0, %arg1, %c0_i32 : i32, i32, i32
  }
}

</mosaic_0001>

<llo_original>
// kernel: tpu_custom_call.1
$region0: #{tpu_custom_call.1}
  #allocation0 [shape = 'u32[]', space=smem, size = 0x4, offset = 0x4, fixed_abs, tag = 'smem constant byte address 0x4 - core index']
  #allocation1 [shape = 'u32[144,128]{1,0:T(1,128)}', space=vmem, size = 0x12000, scoped, tag = 'internal scratch']
  #allocation2 [shape = 'f32[8,96]{1,0:T(8,128)}', space=vmem, size = 0x1000, scoped, tag = 'scratch operand']
  #allocation3 [shape = 'f32[8,32]{1,0:T(8,128)}', space=vmem, size = 0x1000, scoped, tag = 'scratch operand']
  %s0 = inlined_call_operand.hbm [shape: f32[2,8,32], index: 0, kind: input, shape index: {}]
  %s1 = inlined_call_operand.hbm [shape: f32[32,96], index: 1, kind: input, shape index: {}]
  %s2 = inlined_call_operand.hbm [shape: f32[1,96], index: 2, kind: input, shape index: {}]
  %s3 = inlined_call_operand.hbm [shape: f32[32,32], index: 3, kind: input, shape index: {}]
  %s4 = inlined_call_operand.hbm [shape: f32[1,32], index: 4, kind: input, shape index: {}]
  %s5 = inlined_call_operand.hbm [shape: f32[2,8,32], index: 5, kind: output, shape index: {}]
  %s6 = sld [smem:[#allocation0]]
  $region73: #{tpu_custom_call.1} parent=0
    _
  %s8 = ssub.s32 1, %s6
  %s9 = scalar_select 0, %s8, %s6
  $region1: #{tpu_custom_call.1} parent=0
    #allocation4 [shape = 'u8[8192]{0}', space=vmem, size = 0x2000, scoped, tag = 'input window, operand 0']
    #allocation5 [shape = 's32[2]{0}', space=sflag, size = 0x8, scoped, tag = 'scoped memory for tpu_custom_call.1']
    #allocation6 [shape = 's32[2]{0}', space=sflag, size = 0x8, scoped, tag = 'scoped memory for tpu_custom_call.1']
    #allocation7 [shape = 'u8[16384]{0}', space=vmem, size = 0x4000, scoped, tag = 'input window, operand 1, single buffered']
    #allocation8 [shape = 's32[1]{0}', space=sflag, size = 0x4, scoped, tag = 'scoped memory for tpu_custom_call.1']
    #allocation9 [shape = 'u8[512]{0}', space=vmem, size = 0x400, scoped, tag = 'input window, operand 2, single buffered']
    #allocation10 [shape = 'u8[16384]{0}', space=vmem, size = 0x4000, scoped, tag = 'input window, operand 3, single buffered']
    #allocation11 [shape = 's32[1]{0}', space=sflag, size = 0x4, scoped, tag = 'scoped memory for tpu_custom_call.1']
    #allocation12 [shape = 'u8[512]{0}', space=vmem, size = 0x400, scoped, tag = 'input window, operand 4, single buffered']
    #allocation13 [shape = 'u8[8192]{0}', space=vmem, size = 0x2000, scoped, tag = 'output window, operand 0']
    %10 = vsyncpa [#allocation5], 0
    %s11 = scalar_lea.sflag [#allocation5], 1
    %12 = vsyncpa %s11, 0
    %13 = vsyncpa [#allocation8], 0
    %14 = vsyncpa [#allocation11], 0
    %15 = vsyncpa [#allocation6], 0
    %s16 = scalar_lea.sflag [#allocation6], 1
    %17 = vsyncpa %s16, 0
    loop: start=0, step=1, limit=4
    $region2: #{tpu_custom_call.1} parent=1 // loop_pre_header
      _
    $region3: #{tpu_custom_call.1} parent=1 // loop_header
      %s19 = sphi 0, %s23
      %p20 = scmp.ge.s32.totalorder %s19, 4
      %s26 = sphi 0, %s38
      %s27 = sphi 0, %s34
      %s28 = sphi 0, %s26
      %s29 = sphi 0, %s27
      %s30 = sphi 0, %s28
      %s31 = sphi 0, %s29
      %s41 = sphi 0, %s43
      %s44 = sphi 0, %s41
      %s45 = sphi 0, %s44
      %s61 = sphi 0, %s45
      %s65 = sphi 0, %s65
      %s67 = sphi 0, %s65
      %s68 = sphi 0, %s67
      %s82 = sphi 0, %s68
      %s86 = sphi 0, %s86
      %s88 = sphi 0, %s86
      %s89 = sphi 0, %s88
      %s103 = sphi 0, %s89
      %s107 = sphi 0, %s107
      %s109 = sphi 0, %s107
      %s110 = sphi 0, %s109
      %s124 = sphi 0, %s110
      %s128 = sphi 0, %s128
      %s130 = sphi 0, %s128
      %s131 = sphi 0, %s130
      %s145 = sphi 0, %s131
      %s153 = sphi 0, %s155
      %s156 = sphi 0, %s153
      %s157 = sphi 0, %s156
      %s173 = sphi 0, %s157
    $region4: #{tpu_custom_call.1} parent=1 // loop_header_branch
      %22 = sbr.rel (%p20) target = $region8
    $region5: #{tpu_custom_call.1} parent=1 // loop_body
      %s24 = ssub.s32 %s19, 1
      %s25 = ssub.s32 %s19, 2
      %s32 = sadd.s32 1, %s27
      %p33 = scmp.ge.s32.totalorder %s32, 1
      %s34 = scalar_select %p33, 0, %s32
      %s35 = sadd.s32 1, %s26
      %s36 = scalar_select %p33, %s35, %s26
      %p37 = scmp.ge.s32.totalorder %s36, 2
      %s38 = scalar_select %p37, 0, %s36
      %s39 = ssub.s32 %s26, %s38
      %p40 = scmp.eq.s32.totalorder %s39, 0
      %s42 = sadd.s32 %s41, 1
      %s43 = scalar_select %p40, %s41, %s42
      %p46 = pneg %p40
      %p47 = scmp.eq.s32.totalorder %s19, 1
      %p48 = por %p46, %p47
      %p49 = scmp.ne.s32.totalorder %s41, %s44
      %p50 = scmp.eq.s32.totalorder %s19, 0
      %p51 = por %p49, %p50
      %p52 = scmp.ne.s32.totalorder %s41, %s44
      %p53 = scmp.eq.s32.totalorder %s24, 1
      %p54 = por %p52, %p53
      %p55 = scmp.ne.s32.totalorder %s44, %s45
      %p56 = scmp.eq.s32.totalorder %s24, 0
      %p57 = por %p55, %p56
      %p58 = scmp.ne.s32.totalorder %s44, %s45
      %p59 = scmp.eq.s32.totalorder %s25, 1
      %p60 = por %p58, %p59
      %p62 = scmp.ne.s32.totalorder %s45, %s61
      %p63 = scmp.eq.s32.totalorder %s25, 0
      %p64 = por %p62, %p63
      %s66 = sadd.s32 %s65, 1
      %p69 = scmp.eq.s32.totalorder %s19, 1
      %p70 = scmp.ne.s32.totalorder %s65, %s67
      %p71 = scmp.eq.s32.totalorder %s19, 0
      %p72 = por %p70, %p71
      %p73 = scmp.ne.s32.totalorder %s65, %s67
      %p74 = scmp.eq.s32.totalorder %s24, 1
      %p75 = por %p73, %p74
      %p76 = scmp.ne.s32.totalorder %s67, %s68
      %p77 = scmp.eq.s32.totalorder %s24, 0
      %p78 = por %p76, %p77
      %p79 = scmp.ne.s32.totalorder %s67, %s68
      %p80 = scmp.eq.s32.totalorder %s25, 1
      %p81 = por %p79, %p80
      %p83 = scmp.ne.s32.totalorder %s68, %s82
      %p84 = scmp.eq.s32.totalorder %s25, 0
      %p85 = por %p83, %p84
      %s87 = sadd.s32 %s86, 1
      %p90 = scmp.eq.s32.totalorder %s19, 1
      %p91 = scmp.ne.s32.totalorder %s86, %s88
      %p92 = scmp.eq.s32.totalorder %s19, 0
      %p93 = por %p91, %p92
      %p94 = scmp.ne.s32.totalorder %s86, %s88
      %p95 = scmp.eq.s32.totalorder %s24, 1
      %p96 = por %p94, %p95
      %p97 = scmp.ne.s32.totalorder %s88, %s89
      %p98 = scmp.eq.s32.totalorder %s24, 0
      %p99 = por %p97, %p98
      %p100 = scmp.ne.s32.totalorder %s88, %s89
      %p101 = scmp.eq.s32.totalorder %s25, 1
      %p102 = por %p100, %p101
      %p104 = scmp.ne.s32.totalorder %s89, %s103
      %p105 = scmp.eq.s32.totalorder %s25, 0
      %p106 = por %p104, %p105
      %s108 = sadd.s32 %s107, 1
      %p111 = scmp.eq.s32.totalorder %s19, 1
      %p112 = scmp.ne.s32.totalorder %s107, %s109
      %p113 = scmp.eq.s32.totalorder %s19, 0
      %p114 = por %p112, %p113
      %p115 = scmp.ne.s32.totalorder %s107, %s109
      %p116 = scmp.eq.s32.totalorder %s24, 1
      %p117 = por %p115, %p116
      %p118 = scmp.ne.s32.totalorder %s109, %s110
      %p119 = scmp.eq.s32.totalorder %s24, 0
      %p120 = por %p118, %p119
      %p121 = scmp.ne.s32.totalorder %s109, %s110
      %p122 = scmp.eq.s32.totalorder %s25, 1
      %p123 = por %p121, %p122
      %p125 = scmp.ne.s32.totalorder %s110, %s124
      %p126 = scmp.eq.s32.totalorder %s25, 0
      %p127 = por %p125, %p126
      %s129 = sadd.s32 %s128, 1
      %p132 = scmp.eq.s32.totalorder %s19, 1
      %p133 = scmp.ne.s32.totalorder %s128, %s130
      %p134 = scmp.eq.s32.totalorder %s19, 0
      %p135 = por %p133, %p134
      %p136 = scmp.ne.s32.totalorder %s128, %s130
      %p137 = scmp.eq.s32.totalorder %s24, 1
      %p138 = por %p136, %p137
      %p139 = scmp.ne.s32.totalorder %s130, %s131
      %p140 = scmp.eq.s32.totalorder %s24, 0
      %p141 = por %p139, %p140
      %p142 = scmp.ne.s32.totalorder %s130, %s131
      %p143 = scmp.eq.s32.totalorder %s25, 1
      %p144 = por %p142, %p143
      %p146 = scmp.ne.s32.totalorder %s131, %s145
      %p147 = scmp.eq.s32.totalorder %s25, 0
      %p148 = por %p146, %p147
      %s149 = ssub.s32 %s26, %s38
      %s150 = ssub.s32 %s27, %s34
      %s151 = sor.u32 %s149, %s150
      %p152 = scmp.eq.s32.totalorder %s151, 0
      %s154 = sadd.s32 %s153, 1
      %s155 = scalar_select %p152, %s153, %s154
      %p158 = pneg %p152
      %p159 = scmp.eq.s32.totalorder %s19, 1
      %p160 = por %p158, %p159
      %p161 = scmp.ne.s32.totalorder %s153, %s156
      %p162 = scmp.eq.s32.totalorder %s19, 0
      %p163 = por %p161, %p162
      %p164 = scmp.ne.s32.totalorder %s153, %s156
      %p165 = scmp.eq.s32.totalorder %s24, 1
      %p166 = por %p164, %p165
      %p167 = scmp.ne.s32.totalorder %s156, %s157
      %p168 = scmp.eq.s32.totalorder %s24, 0
      %p169 = por %p167, %p168
      %p170 = scmp.ne.s32.totalorder %s156, %s157
      %p171 = scmp.eq.s32.totalorder %s25, 1
      %p172 = por %p170, %p171
      %p174 = scmp.ne.s32.totalorder %s157, %s173
      %p175 = scmp.eq.s32.totalorder %s25, 0
      %p176 = por %p174, %p175
      %p177 = scmp.le.s32.totalorder 1, %s19
      %p178 = scmp.lt.s32.totalorder %s19, 3
      %p179 = pnand %p177, %p178
      %p180 = pneg %p179
      // Predicated region
      $region9: #{tpu_custom_call.1} parent=5 // pred_check
        _
      $region10: #{tpu_custom_call.1} parent=5 // pred_check_branch
        %182 = sbr.rel (%p179) target = $region12
      $region11: #{tpu_custom_call.1} parent=5 // pred_region
        %s183 = ssub.s32 %s19, 1
        // Predicated region
        $region13: #{tpu_custom_call.1} parent=11 // pred_check
          %p184 = pneg %p78
        $region14: #{tpu_custom_call.1} parent=11 // pred_check_branch
          %186 = sbr.rel (%p184) target = $region16
        $region15: #{tpu_custom_call.1} parent=11 // pred_region
          %s188 = ssub.s32 512, 512
          %189 = vsyncadd [#allocation8], %s188
          %s190 = sshll.u32 [#allocation7], 4
          %s191 = int_to_ptr.vmem [resolvable:$true] %s190
          %196 = dma.hbm_to_vmem [thread:$0]  %s1, 512, %s191, [#allocation8], 128, 128, 8
        $region16: #{tpu_custom_call.1} parent=11 // pred_fallthru
          _
        // Predicated region
        $region17: #{tpu_custom_call.1} parent=11 // pred_check
          %p197 = pneg %p99
        $region18: #{tpu_custom_call.1} parent=11 // pred_check_branch
          %199 = sbr.rel (%p197) target = $region20
        $region19: #{tpu_custom_call.1} parent=11 // pred_region
          %s201 = ssub.s32 16, 16
          %202 = vsyncadd [#allocation8], %s201
          %s204 = sshll.u32 [#allocation9], 4
          %s205 = int_to_ptr.vmem [resolvable:$true] %s204
          %207 = dma.hbm_to_vmem [thread:$0]  %s2, 16, %s205, [#allocation8]
        $region20: #{tpu_custom_call.1} parent=11 // pred_fallthru
          _
        // Predicated region
        $region21: #{tpu_custom_call.1} parent=11 // pred_check
          %p208 = pneg %p120
        $region22: #{tpu_custom_call.1} parent=11 // pred_check_branch
          %210 = sbr.rel (%p208) target = $region24
        $region23: #{tpu_custom_call.1} parent=11 // pred_region
          %s212 = ssub.s32 512, 512
          %213 = vsyncadd [#allocation11], %s212
          %s214 = sshll.u32 [#allocation10], 4
          %s215 = int_to_ptr.vmem [resolvable:$true] %s214
          %220 = dma.hbm_to_vmem [thread:$0]  %s3, 512, %s215, [#allocation11], 128, 128, 8
        $region24: #{tpu_custom_call.1} parent=11 // pred_fallthru
          _
        // Predicated region
        $region25: #{tpu_custom_call.1} parent=11 // pred_check
          %p221 = pneg %p141
        $region26: #{tpu_custom_call.1} parent=11 // pred_check_branch
          %223 = sbr.rel (%p221) target = $region28
        $region27: #{tpu_custom_call.1} parent=11 // pred_region
          %s225 = ssub.s32 16, 16
          %226 = vsyncadd [#allocation11], %s225
          %s228 = sshll.u32 [#allocation12], 4
          %s229 = int_to_ptr.vmem [resolvable:$true] %s228
          %231 = dma.hbm_to_vmem [thread:$0]  %s4, 16, %s229, [#allocation11]
        $region28: #{tpu_custom_call.1} parent=11 // pred_fallthru
          _
      $region12: #{tpu_custom_call.1} parent=5 // pred_fallthru
        _
      %p232 = scmp.lt.s32.totalorder %s19, 2
      // Predicated region
      $region29: #{tpu_custom_call.1} parent=5 // pred_check
        %p233 = pneg %p232
      $region30: #{tpu_custom_call.1} parent=5 // pred_check_branch
        %235 = sbr.rel (%p233) target = $region32
      $region31: #{tpu_custom_call.1} parent=5 // pred_region
        // Predicated region
        $region33: #{tpu_custom_call.1} parent=31 // pred_check
          %p236 = pneg %p51
        $region34: #{tpu_custom_call.1} parent=31 // pred_check_branch
          %238 = sbr.rel (%p236) target = $region36
        $region35: #{tpu_custom_call.1} parent=31 // pred_region
          %s239 = sand.u32 %s41, 1
          %s240 = scalar_lea.sflag [#allocation5], %s239
          %s241 = sand.u32 %s41, 1
          %s242 = smul.addr %s241, 8
          %s243 = scalar_lea.vmem [#allocation4], %s242
          %s245 = ssub.s32 128, 128
          %246 = vsyncadd %s240, %s245
          %s247 = smul.addr %s26, 128
          %s248 = scalar_lea.hbm %s0, %s247
          %s250 = sshll.u32 %s243, 4
          %s251 = int_to_ptr.vmem [resolvable:$true] %s250
          %253 = dma.hbm_to_vmem [thread:$0]  %s248, 128, %s251, %s240
        $region36: #{tpu_custom_call.1} parent=31 // pred_fallthru
          _
      $region32: #{tpu_custom_call.1} parent=5 // pred_fallthru
        _
      %p254 = scmp.le.s32.totalorder 1, %s19
      %p255 = scmp.lt.s32.totalorder %s19, 3
      %p256 = pnand %p254, %p255
      %p257 = pneg %p256
      // Predicated region
      $region37: #{tpu_custom_call.1} parent=5 // pred_check
        _
      $region38: #{tpu_custom_call.1} parent=5 // pred_check_branch
        %259 = sbr.rel (%p256) target = $region40
      $region39: #{tpu_custom_call.1} parent=5 // pred_region
        %s260 = ssub.s32 %s19, 1
        %s261 = sand.u32 %s44, 1
        %s262 = scalar_lea.sflag [#allocation5], %s261
        %s263 = sand.u32 %s44, 1
        %s264 = smul.addr %s263, 8
        %s265 = scalar_lea.vmem [#allocation4], %s264
        // Predicated region
        $region41: #{tpu_custom_call.1} parent=39 // pred_check
          %p266 = pneg %p57
        $region42: #{tpu_custom_call.1} parent=39 // pred_check_branch
          %268 = sbr.rel (%p266) target = $region44
        $region43: #{tpu_custom_call.1} parent=39 // pred_region
          %269 = dma.done %s262, 128
        $region44: #{tpu_custom_call.1} parent=39 // pred_fallthru
          _
        // Predicated region
        $region45: #{tpu_custom_call.1} parent=39 // pred_check
          %p270 = pneg %p78
        $region46: #{tpu_custom_call.1} parent=39 // pred_check_branch
          %272 = sbr.rel (%p270) target = $region48
        $region47: #{tpu_custom_call.1} parent=39 // pred_region
          %273 = dma.done [#allocation8], 512
        $region48: #{tpu_custom_call.1} parent=39 // pred_fallthru
          _
        // Predicated region
        $region49: #{tpu_custom_call.1} parent=39 // pred_check
          %p274 = pneg %p99
        $region50: #{tpu_custom_call.1} parent=39 // pred_check_branch
          %276 = sbr.rel (%p274) target = $region52
        $region51: #{tpu_custom_call.1} parent=39 // pred_region
          %277 = dma.done [#allocation8], 16
        $region52: #{tpu_custom_call.1} parent=39 // pred_fallthru
          _
        // Predicated region
        $region53: #{tpu_custom_call.1} parent=39 // pred_check
          %p278 = pneg %p120
        $region54: #{tpu_custom_call.1} parent=39 // pred_check_branch
          %280 = sbr.rel (%p278) target = $region56
        $region55: #{tpu_custom_call.1} parent=39 // pred_region
          %281 = dma.done [#allocation11], 512
        $region56: #{tpu_custom_call.1} parent=39 // pred_fallthru
          _
        // Predicated region
        $region57: #{tpu_custom_call.1} parent=39 // pred_check
          %p282 = pneg %p141
        $region58: #{tpu_custom_call.1} parent=39 // pred_check_branch
          %284 = sbr.rel (%p282) target = $region60
        $region59: #{tpu_custom_call.1} parent=39 // pred_region
          %285 = dma.done [#allocation11], 16
        $region60: #{tpu_custom_call.1} parent=39 // pred_fallthru
          _
        %s286 = sand.u32 %s44, 1
        %s287 = scalar_lea.sflag [#allocation5], %s286
        %s288 = sand.u32 %s44, 1
        %s289 = smul.addr %s288, 8
        %s290 = scalar_lea.vmem [#allocation4], %s289
        %p291 = pneg %p57
        %p292 = pneg %p54
        %p293 = pneg %p78
        %p294 = pneg %p75
        %p295 = pneg %p99
        %p296 = pneg %p96
        %p297 = pneg %p120
        %p298 = pneg %p117
        %p299 = pneg %p141
        %p300 = pneg %p138
        %p301 = pneg %p169
        %p302 = pneg %p166
        %s303 = sand.u32 %s156, 1
        %s304 = scalar_lea.sflag [#allocation6], %s303
        %s305 = sand.u32 %s156, 1
        %s306 = smul.addr %s305, 8
        %s307 = scalar_lea.vmem [#allocation13], %s306
        %v308 = vld [vmem:[%s265] sm:$0xff]
        %v309 = vld [vmem:[#allocation7] sm:$0xff]
        %v310 = vld [vmem:[#allocation7 + $0x8] sm:$0xff]
        %v311 = vld [vmem:[#allocation7 + $0x10] sm:$0xff]
        %v312 = vld [vmem:[#allocation7 + $0x18] sm:$0xff]
        %vm313 = vcmask 261120
        %v315 = vsel %vm313, %v308, 0
        %317 = vmatprep.subr.mxu0 0.0
        %318 = vmatpush1.msra.mxu0 %v309
        %319 = vmatprep.subr.mxu0 0.0
        %320 = vmatpush1.msra.mxu0 %v310
        %321 = vmatprep.subr.mxu0 0.0
        %322 = vmatpush1.msra.mxu0 %v311
        %323 = vmatprep.subr.mxu0 0.0
        %324 = vmatpush1.msra.mxu0 %v312
        %325 = vmatprep.subr.mxu0 0.0
        %326 = vmatpush1.msra.mxu0 0.0
        %327 = vmatprep.subr.mxu0 0.0
        %328 = vmatpush1.msra.mxu0 0.0
        %329 = vmatprep.subr.mxu0 0.0
        %330 = vmatpush1.msra.mxu0 0.0
        %331 = vmatprep.subr.mxu0 0.0
        %332 = vmatpush1.msra.mxu0 0.0
        %333 = vmatprep.subr.mxu0 0.0
        %334 = vmatpush1.msra.mxu0 0.0
        %335 = vmatprep.subr.mxu0 0.0
        %336 = vmatpush1.msra.mxu0 0.0
        %337 = vmatprep.subr.mxu0 0.0
        %338 = vmatpush1.msra.mxu0 0.0
        %339 = vmatprep.subr.mxu0 0.0
        %340 = vmatpush1.msra.mxu0 0.0
        %341 = vmatprep.subr.mxu0 0.0
        %342 = vmatpush1.msra.mxu0 0.0
        %343 = vmatprep.subr.mxu0 0.0
        %344 = vmatpush1.msra.mxu0 0.0
        %345 = vmatprep.subr.mxu0 0.0
        %346 = vmatpush1.msra.mxu0 0.0
        %347 = vmatprep.subr.mxu0 0.0
        %348 = vmatpush1.msra.mxu0 0.0
        %349 = vmatprep.subr.mxu0 0.0
        %350 = vmatpush1.msra.mxu0 0.0
        %351 = vmatprep.subr.mxu0 0.0
        %352 = vmatpush1.msra.mxu0 0.0
        %353 = vmatprep.subr.mxu0 0.0
        %354 = vmatpush1.msra.mxu0 0.0
        %355 = vmatprep.subr.mxu0 0.0
        %356 = vmatpush1.msra.mxu0 0.0
        %357 = vmatprep.subr.mxu0 0.0
        %358 = vmatpush1.msra.mxu0 0.0
        %359 = vmatprep.subr.mxu0 0.0
        %360 = vmatpush1.msra.mxu0 0.0
        %361 = vmatprep.subr.mxu0 0.0
        %362 = vmatpush1.msra.mxu0 0.0
        %363 = vmatprep.subr.mxu0 0.0
        %364 = vmatpush1.msra.mxu0 0.0
        %365 = vmatprep.subr.mxu0 0.0
        %366 = vmatpush1.msra.mxu0 0.0
        %367 = vmatprep.subr.mxu0 0.0
        %368 = vmatpush1.msra.mxu0 0.0
        %369 = vmatprep.subr.mxu0 0.0
        %370 = vmatpush1.msra.mxu0 0.0
        %371 = vmatprep.subr.mxu0 0.0
        %372 = vmatpush1.msra.mxu0 0.0
        %373 = vmatprep.subr.mxu0 0.0
        %374 = vmatpush1.msra.mxu0 0.0
        %375 = vmatprep.subr.mxu0 0.0
        %376 = vmatpush1.msra.mxu0 0.0
        %377 = vmatprep.subr.mxu0 0.0
        %378 = vmatpush1.msra.mxu0 0.0
        %379 = vmatprep.subr.mxu0 0.0
        %380 = vmatpush1.msra.mxu0 0.0
        %381 = vmatprep.mubr.f32.mxu0 0.0
        %382 = vmatmul.mubr.f32.gmra.mrb[0].mxu0 %v315
        %v383 = vpop.f32.mrb[0].mxu0
        %v384 = vadd.f32 0.0, %v383
        %v385 = vpop.f32.mrb[0].mxu0
        %386 = vdwg.mxu0
        %vm387 = vcmask 785408
        %388 = vst.msk [vmem:[#allocation2] sm:$0xff] %vm387, %v384
        %s389 = smul.u32 %s29, 8
        %s390 = scalar_lea.vmem [#allocation2], %s389
        %v391 = vld [vmem:[%s390] sm:$0xff]
        %v392 = vld [vmem:[#allocation2] sm:$0xff]
        %394 = vrot.lane.b32.xlu0 %v392, 96
        %v395 = vpop.permute.xlu0 %394
        %vm396 = vcmask 64512
        %v398 = vsel %vm396, %v391, 0
        %v400 = vsel %vm396, %v395, 0
        %402 = vmatprep.subr.mxu0 0.0
        %403 = vmatpush1.xpose.msra.mxu0 %v400
        %404 = vmatprep.subr.mxu0 0.0
        %405 = vmatpush1.xpose.msra.mxu0 0.0
        %406 = vmatprep.subr.mxu0 0.0
        %407 = vmatpush1.xpose.msra.mxu0 0.0
        %408 = vmatprep.subr.mxu0 0.0
        %409 = vmatpush1.xpose.msra.mxu0 0.0
        %410 = vmatprep.subr.mxu0 0.0
        %411 = vmatpush1.xpose.msra.mxu0 0.0
        %412 = vmatprep.subr.mxu0 0.0
        %413 = vmatpush1.xpose.msra.mxu0 0.0
        %414 = vmatprep.subr.mxu0 0.0
        %415 = vmatpush1.xpose.msra.mxu0 0.0
        %416 = vmatprep.subr.mxu0 0.0
        %417 = vmatpush1.xpose.msra.mxu0 0.0
        %418 = vmatprep.subr.mxu0 0.0
        %419 = vmatpush1.xpose.msra.mxu0 0.0
        %420 = vmatprep.subr.mxu0 0.0
        %421 = vmatpush1.xpose.msra.mxu0 0.0
        %422 = vmatprep.subr.mxu0 0.0
        %423 = vmatpush1.xpose.msra.mxu0 0.0
        %424 = vmatprep.subr.mxu0 0.0
        %425 = vmatpush1.xpose.msra.mxu0 0.0
        %426 = vmatprep.subr.mxu0 0.0
        %427 = vmatpush1.xpose.msra.mxu0 0.0
        %428 = vmatprep.subr.mxu0 0.0
        %429 = vmatpush1.xpose.msra.mxu0 0.0
        %430 = vmatprep.subr.mxu0 0.0
        %431 = vmatpush1.xpose.msra.mxu0 0.0
        %432 = vmatprep.subr.mxu0 0.0
        %433 = vmatpush1.xpose.msra.mxu0 0.0
        %434 = vmatprep.subr.mxu0 0.0
        %435 = vmatpush1.xpose.msra.mxu0 0.0
        %436 = vmatprep.subr.mxu0 0.0
        %437 = vmatpush1.xpose.msra.mxu0 0.0
        %438 = vmatprep.subr.mxu0 0.0
        %439 = vmatpush1.xpose.msra.mxu0 0.0
        %440 = vmatprep.subr.mxu0 0.0
        %441 = vmatpush1.xpose.msra.mxu0 0.0
        %442 = vmatprep.subr.mxu0 0.0
        %443 = vmatpush1.xpose.msra.mxu0 0.0
        %444 = vmatprep.subr.mxu0 0.0
        %445 = vmatpush1.xpose.msra.mxu0 0.0
        %446 = vmatprep.subr.mxu0 0.0
        %447 = vmatpush1.xpose.msra.mxu0 0.0
        %448 = vmatprep.subr.mxu0 0.0
        %449 = vmatpush1.xpose.msra.mxu0 0.0
        %450 = vmatprep.subr.mxu0 0.0
        %451 = vmatpush1.xpose.msra.mxu0 0.0
        %452 = vmatprep.subr.mxu0 0.0
        %453 = vmatpush1.xpose.msra.mxu0 0.0
        %454 = vmatprep.subr.mxu0 0.0
        %455 = vmatpush1.xpose.msra.mxu0 0.0
        %456 = vmatprep.subr.mxu0 0.0
        %457 = vmatpush1.xpose.msra.mxu0 0.0
        %458 = vmatprep.subr.mxu0 0.0
        %459 = vmatpush1.xpose.msra.mxu0 0.0
        %460 = vmatprep.subr.mxu0 0.0
        %461 = vmatpush1.xpose.msra.mxu0 0.0
        %462 = vmatprep.subr.mxu0 0.0
        %463 = vmatpush1.xpose.msra.mxu0 0.0
        %464 = vmatprep.subr.mxu0 0.0
        %465 = vmatpush1.xpose.msra.mxu0 0.0
        %466 = vmatprep.mubr.f32.mxu0 0.0
        %467 = vmatmul.mubr.f32.gmra.mrb[0].mxu0 %v398
        %v468 = vpop.f32.mrb[0].mxu0
        %v469 = vadd.f32 0.0, %v468
        %v470 = vpop.f32.mrb[0].mxu0
        %471 = vdwg.mxu0
        %v472 = vmul.f32 %v469, 0.35355338
        %v473 = vsel %vm396, %v472, -inf
        %474 = vmax.xlane.f32.xlu0 %v473
        %v475 = vpop.xlane.xlu0 %474
        %v476 = vsub.f32 %v472, %v475
        %v477 = vmul.f32 %v476, 1.442695
        %v478 = vpow.pop %v477
        %v479 = vsel %vm396, %v478, 0.0
        %480 = vadd.xlane.f32.xlu0 %v479
        %v481 = vpop.xlane.xlu0 %480
        %v482 = vrcp.pop %v481
        %v483 = vmul.f32 %v478, %v482
        %484 = vrot.lane.b32.xlu0 %v392, 64
        %v485 = vpop.permute.xlu0 %484
        %v488 = vsel %vm396, %v483, 0
        %490 = vmatprep.subr.mxu0 0.0
        %491 = vmatpush1.msra.mxu0 %v485
        %492 = vmatprep.subr.mxu0 0.0
        %493 = vmatpush1.msra.mxu0 0.0
        %494 = vmatprep.subr.mxu0 0.0
        %495 = vmatpush1.msra.mxu0 0.0
        %496 = vmatprep.subr.mxu0 0.0
        %497 = vmatpush1.msra.mxu0 0.0
        %498 = vmatprep.subr.mxu0 0.0
        %499 = vmatpush1.msra.mxu0 0.0
        %500 = vmatprep.subr.mxu0 0.0
        %501 = vmatpush1.msra.mxu0 0.0
        %502 = vmatprep.subr.mxu0 0.0
        %503 = vmatpush1.msra.mxu0 0.0
        %504 = vmatprep.subr.mxu0 0.0
        %505 = vmatpush1.msra.mxu0 0.0
        %506 = vmatprep.subr.mxu0 0.0
        %507 = vmatpush1.msra.mxu0 0.0
        %508 = vmatprep.subr.mxu0 0.0
        %509 = vmatpush1.msra.mxu0 0.0
        %510 = vmatprep.subr.mxu0 0.0
        %511 = vmatpush1.msra.mxu0 0.0
        %512 = vmatprep.subr.mxu0 0.0
        %513 = vmatpush1.msra.mxu0 0.0
        %514 = vmatprep.subr.mxu0 0.0
        %515 = vmatpush1.msra.mxu0 0.0
        %516 = vmatprep.subr.mxu0 0.0
        %517 = vmatpush1.msra.mxu0 0.0
        %518 = vmatprep.subr.mxu0 0.0
        %519 = vmatpush1.msra.mxu0 0.0
        %520 = vmatprep.subr.mxu0 0.0
        %521 = vmatpush1.msra.mxu0 0.0
        %522 = vmatprep.subr.mxu0 0.0
        %523 = vmatpush1.msra.mxu0 0.0
        %524 = vmatprep.subr.mxu0 0.0
        %525 = vmatpush1.msra.mxu0 0.0
        %526 = vmatprep.subr.mxu0 0.0
        %527 = vmatpush1.msra.mxu0 0.0
        %528 = vmatprep.subr.mxu0 0.0
        %529 = vmatpush1.msra.mxu0 0.0
        %530 = vmatprep.subr.mxu0 0.0
        %531 = vmatpush1.msra.mxu0 0.0
        %532 = vmatprep.subr.mxu0 0.0
        %533 = vmatpush1.msra.mxu0 0.0
        %534 = vmatprep.subr.mxu0 0.0
        %535 = vmatpush1.msra.mxu0 0.0
        %536 = vmatprep.subr.mxu0 0.0
        %537 = vmatpush1.msra.mxu0 0.0
        %538 = vmatprep.subr.mxu0 0.0
        %539 = vmatpush1.msra.mxu0 0.0
        %540 = vmatprep.subr.mxu0 0.0
        %541 = vmatpush1.msra.mxu0 0.0
        %542 = vmatprep.subr.mxu0 0.0
        %543 = vmatpush1.msra.mxu0 0.0
        %544 = vmatprep.subr.mxu0 0.0
        %545 = vmatpush1.msra.mxu0 0.0
        %546 = vmatprep.subr.mxu0 0.0
        %547 = vmatpush1.msra.mxu0 0.0
        %548 = vmatprep.subr.mxu0 0.0
        %549 = vmatpush1.msra.mxu0 0.0
        %550 = vmatprep.subr.mxu0 0.0
        %551 = vmatpush1.msra.mxu0 0.0
        %552 = vmatprep.subr.mxu0 0.0
        %553 = vmatpush1.msra.mxu0 0.0
        %554 = vmatprep.mubr.f32.mxu0 0.0
        %555 = vmatmul.mubr.f32.gmra.mrb[0].mxu0 %v488
        %v556 = vpop.f32.mrb[0].mxu0
        %v557 = vadd.f32 0.0, %v556
        %v558 = vpop.f32.mrb[0].mxu0
        %559 = vdwg.mxu0
        %560 = vst.msk [vmem:[#allocation3] sm:$0xff] %vm396, %v557
        %v561 = vld [vmem:[%s390] sm:$0xff]
        %v562 = vld [vmem:[#allocation2] sm:$0xff]
        %564 = vrot.lane.b32.xlu0 %v561, 120
        %v565 = vpop.permute.xlu0 %564
        %567 = vrot.lane.b32.xlu0 %v562, 88
        %v568 = vpop.permute.xlu0 %567
        %v569 = vsel %vm396, %v565, 0
        %v571 = vsel %vm396, %v568, 0
        %573 = vmatprep.subr.mxu0 0.0
        %574 = vmatpush1.xpose.msra.mxu0 %v571
        %575 = vmatprep.subr.mxu0 0.0
        %576 = vmatpush1.xpose.msra.mxu0 0.0
        %577 = vmatprep.subr.mxu0 0.0
        %578 = vmatpush1.xpose.msra.mxu0 0.0
        %579 = vmatprep.subr.mxu0 0.0
        %580 = vmatpush1.xpose.msra.mxu0 0.0
        %581 = vmatprep.subr.mxu0 0.0
        %582 = vmatpush1.xpose.msra.mxu0 0.0
        %583 = vmatprep.subr.mxu0 0.0
        %584 = vmatpush1.xpose.msra.mxu0 0.0
        %585 = vmatprep.subr.mxu0 0.0
        %586 = vmatpush1.xpose.msra.mxu0 0.0
        %587 = vmatprep.subr.mxu0 0.0
        %588 = vmatpush1.xpose.msra.mxu0 0.0
        %589 = vmatprep.subr.mxu0 0.0
        %590 = vmatpush1.xpose.msra.mxu0 0.0
        %591 = vmatprep.subr.mxu0 0.0
        %592 = vmatpush1.xpose.msra.mxu0 0.0
        %593 = vmatprep.subr.mxu0 0.0
        %594 = vmatpush1.xpose.msra.mxu0 0.0
        %595 = vmatprep.subr.mxu0 0.0
        %596 = vmatpush1.xpose.msra.mxu0 0.0
        %597 = vmatprep.subr.mxu0 0.0
        %598 = vmatpush1.xpose.msra.mxu0 0.0
        %599 = vmatprep.subr.mxu0 0.0
        %600 = vmatpush1.xpose.msra.mxu0 0.0
        %601 = vmatprep.subr.mxu0 0.0
        %602 = vmatpush1.xpose.msra.mxu0 0.0
        %603 = vmatprep.subr.mxu0 0.0
        %604 = vmatpush1.xpose.msra.mxu0 0.0
        %605 = vmatprep.subr.mxu0 0.0
        %606 = vmatpush1.xpose.msra.mxu0 0.0
        %607 = vmatprep.subr.mxu0 0.0
        %608 = vmatpush1.xpose.msra.mxu0 0.0
        %609 = vmatprep.subr.mxu0 0.0
        %610 = vmatpush1.xpose.msra.mxu0 0.0
        %611 = vmatprep.subr.mxu0 0.0
        %612 = vmatpush1.xpose.msra.mxu0 0.0
        %613 = vmatprep.subr.mxu0 0.0
        %614 = vmatpush1.xpose.msra.mxu0 0.0
        %615 = vmatprep.subr.mxu0 0.0
        %616 = vmatpush1.xpose.msra.mxu0 0.0
        %617 = vmatprep.subr.mxu0 0.0
        %618 = vmatpush1.xpose.msra.mxu0 0.0
        %619 = vmatprep.subr.mxu0 0.0
        %620 = vmatpush1.xpose.msra.mxu0 0.0
        %621 = vmatprep.subr.mxu0 0.0
        %622 = vmatpush1.xpose.msra.mxu0 0.0
        %623 = vmatprep.subr.mxu0 0.0
        %624 = vmatpush1.xpose.msra.mxu0 0.0
        %625 = vmatprep.subr.mxu0 0.0
        %626 = vmatpush1.xpose.msra.mxu0 0.0
        %627 = vmatprep.subr.mxu0 0.0
        %628 = vmatpush1.xpose.msra.mxu0 0.0
        %629 = vmatprep.subr.mxu0 0.0
        %630 = vmatpush1.xpose.msra.mxu0 0.0
        %631 = vmatprep.subr.mxu0 0.0
        %632 = vmatpush1.xpose.msra.mxu0 0.0
        %633 = vmatprep.subr.mxu0 0.0
        %634 = vmatpush1.xpose.msra.mxu0 0.0
        %635 = vmatprep.subr.mxu0 0.0
        %636 = vmatpush1.xpose.msra.mxu0 0.0
        %637 = vmatprep.mubr.f32.mxu0 0.0
        %638 = vmatmul.mubr.f32.gmra.mrb[0].mxu0 %v569
        %v639 = vpop.f32.mrb[0].mxu0
        %v640 = vadd.f32 0.0, %v639
        %v641 = vpop.f32.mrb[0].mxu0
        %642 = vdwg.mxu0
        %v643 = vmul.f32 %v640, 0.35355338
        %v644 = vsel %vm396, %v643, -inf
        %645 = vmax.xlane.f32.xlu0 %v644
        %v646 = vpop.xlane.xlu0 %645
        %v647 = vsub.f32 %v643, %v646
        %v648 = vmul.f32 %v647, 1.442695
        %v649 = vpow.pop %v648
        %v650 = vsel %vm396, %v649, 0.0
        %651 = vadd.xlane.f32.xlu0 %v650
        %v652 = vpop.xlane.xlu0 %651
        %v653 = vrcp.pop %v652
        %v654 = vmul.f32 %v649, %v653
        %655 = vrot.lane.b32.xlu0 %v562, 56
        %v656 = vpop.permute.xlu0 %655
        %v659 = vsel %vm396, %v654, 0
        %661 = vmatprep.subr.mxu0 0.0
        %662 = vmatpush1.msra.mxu0 %v656
        %663 = vmatprep.subr.mxu0 0.0
        %664 = vmatpush1.msra.mxu0 0.0
        %665 = vmatprep.subr.mxu0 0.0
        %666 = vmatpush1.msra.mxu0 0.0
        %667 = vmatprep.subr.mxu0 0.0
        %668 = vmatpush1.msra.mxu0 0.0
        %669 = vmatprep.subr.mxu0 0.0
        %670 = vmatpush1.msra.mxu0 0.0
        %671 = vmatprep.subr.mxu0 0.0
        %672 = vmatpush1.msra.mxu0 0.0
        %673 = vmatprep.subr.mxu0 0.0
        %674 = vmatpush1.msra.mxu0 0.0
        %675 = vmatprep.subr.mxu0 0.0
        %676 = vmatpush1.msra.mxu0 0.0
        %677 = vmatprep.subr.mxu0 0.0
        %678 = vmatpush1.msra.mxu0 0.0
        %679 = vmatprep.subr.mxu0 0.0
        %680 = vmatpush1.msra.mxu0 0.0
        %681 = vmatprep.subr.mxu0 0.0
        %682 = vmatpush1.msra.mxu0 0.0
        %683 = vmatprep.subr.mxu0 0.0
        %684 = vmatpush1.msra.mxu0 0.0
        %685 = vmatprep.subr.mxu0 0.0
        %686 = vmatpush1.msra.mxu0 0.0
        %687 = vmatprep.subr.mxu0 0.0
        %688 = vmatpush1.msra.mxu0 0.0
        %689 = vmatprep.subr.mxu0 0.0
        %690 = vmatpush1.msra.mxu0 0.0
        %691 = vmatprep.subr.mxu0 0.0
        %692 = vmatpush1.msra.mxu0 0.0
        %693 = vmatprep.subr.mxu0 0.0
        %694 = vmatpush1.msra.mxu0 0.0
        %695 = vmatprep.subr.mxu0 0.0
        %696 = vmatpush1.msra.mxu0 0.0
        %697 = vmatprep.subr.mxu0 0.0
        %698 = vmatpush1.msra.mxu0 0.0
        %699 = vmatprep.subr.mxu0 0.0
        %700 = vmatpush1.msra.mxu0 0.0
        %701 = vmatprep.subr.mxu0 0.0
        %702 = vmatpush1.msra.mxu0 0.0
        %703 = vmatprep.subr.mxu0 0.0
        %704 = vmatpush1.msra.mxu0 0.0
        %705 = vmatprep.subr.mxu0 0.0
        %706 = vmatpush1.msra.mxu0 0.0
        %707 = vmatprep.subr.mxu0 0.0
        %708 = vmatpush1.msra.mxu0 0.0
        %709 = vmatprep.subr.mxu0 0.0
        %710 = vmatpush1.msra.mxu0 0.0
        %711 = vmatprep.subr.mxu0 0.0
        %712 = vmatpush1.msra.mxu0 0.0
        %713 = vmatprep.subr.mxu0 0.0
        %714 = vmatpush1.msra.mxu0 0.0
        %715 = vmatprep.subr.mxu0 0.0
        %716 = vmatpush1.msra.mxu0 0.0
        %717 = vmatprep.subr.mxu0 0.0
        %718 = vmatpush1.msra.mxu0 0.0
        %719 = vmatprep.subr.mxu0 0.0
        %720 = vmatpush1.msra.mxu0 0.0
        %721 = vmatprep.subr.mxu0 0.0
        %722 = vmatpush1.msra.mxu0 0.0
        %723 = vmatprep.subr.mxu0 0.0
        %724 = vmatpush1.msra.mxu0 0.0
        %725 = vmatprep.mubr.f32.mxu0 0.0
        %726 = vmatmul.mubr.f32.gmra.mrb[0].mxu0 %v659
        %v727 = vpop.f32.mrb[0].mxu0
        %v728 = vadd.f32 0.0, %v727
        %v729 = vpop.f32.mrb[0].mxu0
        %730 = vdwg.mxu0
        %732 = vrot.lane.b32.xlu0 %v728, 8
        %v733 = vpop.permute.xlu0 %732
        %vm735 = vcmask 130112
        %736 = vst.msk [vmem:[#allocation3] sm:$0xff] %vm735, %v733
        %v737 = vld [vmem:[%s390] sm:$0xff]
        %v738 = vld [vmem:[#allocation2] sm:$0xff]
        %740 = vrot.lane.b32.xlu0 %v737, 112
        %v741 = vpop.permute.xlu0 %740
        %743 = vrot.lane.b32.xlu0 %v738, 80
        %v744 = vpop.permute.xlu0 %743
        %v745 = vsel %vm396, %v741, 0
        %v747 = vsel %vm396, %v744, 0
        %749 = vmatprep.subr.mxu0 0.0
        %750 = vmatpush1.xpose.msra.mxu0 %v747
        %751 = vmatprep.subr.mxu0 0.0
        %752 = vmatpush1.xpose.msra.mxu0 0.0
        %753 = vmatprep.subr.mxu0 0.0
        %754 = vmatpush1.xpose.msra.mxu0 0.0
        %755 = vmatprep.subr.mxu0 0.0
        %756 = vmatpush1.xpose.msra.mxu0 0.0
        %757 = vmatprep.subr.mxu0 0.0
        %758 = vmatpush1.xpose.msra.mxu0 0.0
        %759 = vmatprep.subr.mxu0 0.0
        %760 = vmatpush1.xpose.msra.mxu0 0.0
        %761 = vmatprep.subr.mxu0 0.0
        %762 = vmatpush1.xpose.msra.mxu0 0.0
        %763 = vmatprep.subr.mxu0 0.0
        %764 = vmatpush1.xpose.msra.mxu0 0.0
        %765 = vmatprep.subr.mxu0 0.0
        %766 = vmatpush1.xpose.msra.mxu0 0.0
        %767 = vmatprep.subr.mxu0 0.0
        %768 = vmatpush1.xpose.msra.mxu0 0.0
        %769 = vmatprep.subr.mxu0 0.0
        %770 = vmatpush1.xpose.msra.mxu0 0.0
        %771 = vmatprep.subr.mxu0 0.0
        %772 = vmatpush1.xpose.msra.mxu0 0.0
        %773 = vmatprep.subr.mxu0 0.0
        %774 = vmatpush1.xpose.msra.mxu0 0.0
        %775 = vmatprep.subr.mxu0 0.0
        %776 = vmatpush1.xpose.msra.mxu0 0.0
        %777 = vmatprep.subr.mxu0 0.0
        %778 = vmatpush1.xpose.msra.mxu0 0.0
        %779 = vmatprep.subr.mxu0 0.0
        %780 = vmatpush1.xpose.msra.mxu0 0.0
        %781 = vmatprep.subr.mxu0 0.0
        %782 = vmatpush1.xpose.msra.mxu0 0.0
        %783 = vmatprep.subr.mxu0 0.0
        %784 = vmatpush1.xpose.msra.mxu0 0.0
        %785 = vmatprep.subr.mxu0 0.0
        %786 = vmatpush1.xpose.msra.mxu0 0.0
        %787 = vmatprep.subr.mxu0 0.0
        %788 = vmatpush1.xpose.msra.mxu0 0.0
        %789 = vmatprep.subr.mxu0 0.0
        %790 = vmatpush1.xpose.msra.mxu0 0.0
        %791 = vmatprep.subr.mxu0 0.0
        %792 = vmatpush1.xpose.msra.mxu0 0.0
        %793 = vmatprep.subr.mxu0 0.0
        %794 = vmatpush1.xpose.msra.mxu0 0.0
        %795 = vmatprep.subr.mxu0 0.0
        %796 = vmatpush1.xpose.msra.mxu0 0.0
        %797 = vmatprep.subr.mxu0 0.0
        %798 = vmatpush1.xpose.msra.mxu0 0.0
        %799 = vmatprep.subr.mxu0 0.0
        %800 = vmatpush1.xpose.msra.mxu0 0.0
        %801 = vmatprep.subr.mxu0 0.0
        %802 = vmatpush1.xpose.msra.mxu0 0.0
        %803 = vmatprep.subr.mxu0 0.0
        %804 = vmatpush1.xpose.msra.mxu0 0.0
        %805 = vmatprep.subr.mxu0 0.0
        %806 = vmatpush1.xpose.msra.mxu0 0.0
        %807 = vmatprep.subr.mxu0 0.0
        %808 = vmatpush1.xpose.msra.mxu0 0.0
        %809 = vmatprep.subr.mxu0 0.0
        %810 = vmatpush1.xpose.msra.mxu0 0.0
        %811 = vmatprep.subr.mxu0 0.0
        %812 = vmatpush1.xpose.msra.mxu0 0.0
        %813 = vmatprep.mubr.f32.mxu0 0.0
        %814 = vmatmul.mubr.f32.gmra.mrb[0].mxu0 %v745
        %v815 = vpop.f32.mrb[0].mxu0
        %v816 = vadd.f32 0.0, %v815
        %v817 = vpop.f32.mrb[0].mxu0
        %818 = vdwg.mxu0
        %v819 = vmul.f32 %v816, 0.35355338
        %v820 = vsel %vm396, %v819, -inf
        %821 = vmax.xlane.f32.xlu0 %v820
        %v822 = vpop.xlane.xlu0 %821
        %v823 = vsub.f32 %v819, %v822
        %v824 = vmul.f32 %v823, 1.442695
        %v825 = vpow.pop %v824
        %v826 = vsel %vm396, %v825, 0.0
        %827 = vadd.xlane.f32.xlu0 %v826
        %v828 = vpop.xlane.xlu0 %827
        %v829 = vrcp.pop %v828
        %v830 = vmul.f32 %v825, %v829
        %831 = vrot.lane.b32.xlu0 %v738, 48
        %v832 = vpop.permute.xlu0 %831
        %v835 = vsel %vm396, %v830, 0
        %837 = vmatprep.subr.mxu0 0.0
        %838 = vmatpush1.msra.mxu0 %v832
        %839 = vmatprep.subr.mxu0 0.0
        %840 = vmatpush1.msra.mxu0 0.0
        %841 = vmatprep.subr.mxu0 0.0
        %842 = vmatpush1.msra.mxu0 0.0
        %843 = vmatprep.subr.mxu0 0.0
        %844 = vmatpush1.msra.mxu0 0.0
        %845 = vmatprep.subr.mxu0 0.0
        %846 = vmatpush1.msra.mxu0 0.0
        %847 = vmatprep.subr.mxu0 0.0
        %848 = vmatpush1.msra.mxu0 0.0
        %849 = vmatprep.subr.mxu0 0.0
        %850 = vmatpush1.msra.mxu0 0.0
        %851 = vmatprep.subr.mxu0 0.0
        %852 = vmatpush1.msra.mxu0 0.0
        %853 = vmatprep.subr.mxu0 0.0
        %854 = vmatpush1.msra.mxu0 0.0
        %855 = vmatprep.subr.mxu0 0.0
        %856 = vmatpush1.msra.mxu0 0.0
        %857 = vmatprep.subr.mxu0 0.0
        %858 = vmatpush1.msra.mxu0 0.0
        %859 = vmatprep.subr.mxu0 0.0
        %860 = vmatpush1.msra.mxu0 0.0
        %861 = vmatprep.subr.mxu0 0.0
        %862 = vmatpush1.msra.mxu0 0.0
        %863 = vmatprep.subr.mxu0 0.0
        %864 = vmatpush1.msra.mxu0 0.0
        %865 = vmatprep.subr.mxu0 0.0
        %866 = vmatpush1.msra.mxu0 0.0
        %867 = vmatprep.subr.mxu0 0.0
        %868 = vmatpush1.msra.mxu0 0.0
        %869 = vmatprep.subr.mxu0 0.0
        %870 = vmatpush1.msra.mxu0 0.0
        %871 = vmatprep.subr.mxu0 0.0
        %872 = vmatpush1.msra.mxu0 0.0
        %873 = vmatprep.subr.mxu0 0.0
        %874 = vmatpush1.msra.mxu0 0.0
        %875 = vmatprep.subr.mxu0 0.0
        %876 = vmatpush1.msra.mxu0 0.0
        %877 = vmatprep.subr.mxu0 0.0
        %878 = vmatpush1.msra.mxu0 0.0
        %879 = vmatprep.subr.mxu0 0.0
        %880 = vmatpush1.msra.mxu0 0.0
        %881 = vmatprep.subr.mxu0 0.0
        %882 = vmatpush1.msra.mxu0 0.0
        %883 = vmatprep.subr.mxu0 0.0
        %884 = vmatpush1.msra.mxu0 0.0
        %885 = vmatprep.subr.mxu0 0.0
        %886 = vmatpush1.msra.mxu0 0.0
        %887 = vmatprep.subr.mxu0 0.0
        %888 = vmatpush1.msra.mxu0 0.0
        %889 = vmatprep.subr.mxu0 0.0
        %890 = vmatpush1.msra.mxu0 0.0
        %891 = vmatprep.subr.mxu0 0.0
        %892 = vmatpush1.msra.mxu0 0.0
        %893 = vmatprep.subr.mxu0 0.0
        %894 = vmatpush1.msra.mxu0 0.0
        %895 = vmatprep.subr.mxu0 0.0
        %896 = vmatpush1.msra.mxu0 0.0
        %897 = vmatprep.subr.mxu0 0.0
        %898 = vmatpush1.msra.mxu0 0.0
        %899 = vmatprep.subr.mxu0 0.0
        %900 = vmatpush1.msra.mxu0 0.0
        %901 = vmatprep.mubr.f32.mxu0 0.0
        %902 = vmatmul.mubr.f32.gmra.mrb[0].mxu0 %v835
        %v903 = vpop.f32.mrb[0].mxu0
        %v904 = vadd.f32 0.0, %v903
        %v905 = vpop.f32.mrb[0].mxu0
        %906 = vdwg.mxu0
        %908 = vrot.lane.b32.xlu0 %v904, 16
        %v909 = vpop.permute.xlu0 %908
        %vm911 = vcmask 195712
        %912 = vst.msk [vmem:[#allocation3] sm:$0xff] %vm911, %v909
        %v913 = vld [vmem:[%s390] sm:$0xff]
        %v914 = vld [vmem:[#allocation2] sm:$0xff]
        %916 = vrot.lane.b32.xlu0 %v913, 104
        %v917 = vpop.permute.xlu0 %916
        %919 = vrot.lane.b32.xlu0 %v914, 72
        %v920 = vpop.permute.xlu0 %919
        %v921 = vsel %vm396, %v917, 0
        %v923 = vsel %vm396, %v920, 0
        %925 = vmatprep.subr.mxu0 0.0
        %926 = vmatpush1.xpose.msra.mxu0 %v923
        %927 = vmatprep.subr.mxu0 0.0
        %928 = vmatpush1.xpose.msra.mxu0 0.0
        %929 = vmatprep.subr.mxu0 0.0
        %930 = vmatpush1.xpose.msra.mxu0 0.0
        %931 = vmatprep.subr.mxu0 0.0
        %932 = vmatpush1.xpose.msra.mxu0 0.0
        %933 = vmatprep.subr.mxu0 0.0
        %934 = vmatpush1.xpose.msra.mxu0 0.0
        %935 = vmatprep.subr.mxu0 0.0
        %936 = vmatpush1.xpose.msra.mxu0 0.0
        %937 = vmatprep.subr.mxu0 0.0
        %938 = vmatpush1.xpose.msra.mxu0 0.0
        %939 = vmatprep.subr.mxu0 0.0
        %940 = vmatpush1.xpose.msra.mxu0 0.0
        %941 = vmatprep.subr.mxu0 0.0
        %942 = vmatpush1.xpose.msra.mxu0 0.0
        %943 = vmatprep.subr.mxu0 0.0
        %944 = vmatpush1.xpose.msra.mxu0 0.0
        %945 = vmatprep.subr.mxu0 0.0
        %946 = vmatpush1.xpose.msra.mxu0 0.0
        %947 = vmatprep.subr.mxu0 0.0
        %948 = vmatpush1.xpose.msra.mxu0 0.0
        %949 = vmatprep.subr.mxu0 0.0
        %950 = vmatpush1.xpose.msra.mxu0 0.0
        %951 = vmatprep.subr.mxu0 0.0
        %952 = vmatpush1.xpose.msra.mxu0 0.0
        %953 = vmatprep.subr.mxu0 0.0
        %954 = vmatpush1.xpose.msra.mxu0 0.0
        %955 = vmatprep.subr.mxu0 0.0
        %956 = vmatpush1.xpose.msra.mxu0 0.0
        %957 = vmatprep.subr.mxu0 0.0
        %958 = vmatpush1.xpose.msra.mxu0 0.0
        %959 = vmatprep.subr.mxu0 0.0
        %960 = vmatpush1.xpose.msra.mxu0 0.0
        %961 = vmatprep.subr.mxu0 0.0
        %962 = vmatpush1.xpose.msra.mxu0 0.0
        %963 = vmatprep.subr.mxu0 0.0
        %964 = vmatpush1.xpose.msra.mxu0 0.0
        %965 = vmatprep.subr.mxu0 0.0
        %966 = vmatpush1.xpose.msra.mxu0 0.0
        %967 = vmatprep.subr.mxu0 0.0
        %968 = vmatpush1.xpose.msra.mxu0 0.0
        %969 = vmatprep.subr.mxu0 0.0
        %970 = vmatpush1.xpose.msra.mxu0 0.0
        %971 = vmatprep.subr.mxu0 0.0
        %972 = vmatpush1.xpose.msra.mxu0 0.0
        %973 = vmatprep.subr.mxu0 0.0
        %974 = vmatpush1.xpose.msra.mxu0 0.0
        %975 = vmatprep.subr.mxu0 0.0
        %976 = vmatpush1.xpose.msra.mxu0 0.0
        %977 = vmatprep.subr.mxu0 0.0
        %978 = vmatpush1.xpose.msra.mxu0 0.0
        %979 = vmatprep.subr.mxu0 0.0
        %980 = vmatpush1.xpose.msra.mxu0 0.0
        %981 = vmatprep.subr.mxu0 0.0
        %982 = vmatpush1.xpose.msra.mxu0 0.0
        %983 = vmatprep.subr.mxu0 0.0
        %984 = vmatpush1.xpose.msra.mxu0 0.0
        %985 = vmatprep.subr.mxu0 0.0
        %986 = vmatpush1.xpose.msra.mxu0 0.0
        %987 = vmatprep.subr.mxu0 0.0
        %988 = vmatpush1.xpose.msra.mxu0 0.0
        %989 = vmatprep.mubr.f32.mxu0 0.0
        %990 = vmatmul.mubr.f32.gmra.mrb[0].mxu0 %v921
        %v991 = vpop.f32.mrb[0].mxu0
        %v992 = vadd.f32 0.0, %v991
        %v993 = vpop.f32.mrb[0].mxu0
        %994 = vdwg.mxu0
        %v995 = vmul.f32 %v992, 0.35355338
        %v996 = vsel %vm396, %v995, -inf
        %997 = vmax.xlane.f32.xlu0 %v996
        %v998 = vpop.xlane.xlu0 %997
        %v999 = vsub.f32 %v995, %v998
        %v1000 = vmul.f32 %v999, 1.442695
        %v1001 = vpow.pop %v1000
        %v1002 = vsel %vm396, %v1001, 0.0
        %1003 = vadd.xlane.f32.xlu0 %v1002
        %v1004 = vpop.xlane.xlu0 %1003
        %v1005 = vrcp.pop %v1004
        %v1006 = vmul.f32 %v1001, %v1005
        %1007 = vrot.lane.b32.xlu0 %v914, 40
        %v1008 = vpop.permute.xlu0 %1007
        %v1011 = vsel %vm396, %v1006, 0
        %1013 = vmatprep.subr.mxu0 0.0
        %1014 = vmatpush1.msra.mxu0 %v1008
        %1015 = vmatprep.subr.mxu0 0.0
        %1016 = vmatpush1.msra.mxu0 0.0
        %1017 = vmatprep.subr.mxu0 0.0
        %1018 = vmatpush1.msra.mxu0 0.0
        %1019 = vmatprep.subr.mxu0 0.0
        %1020 = vmatpush1.msra.mxu0 0.0
        %1021 = vmatprep.subr.mxu0 0.0
        %1022 = vmatpush1.msra.mxu0 0.0
        %1023 = vmatprep.subr.mxu0 0.0
        %1024 = vmatpush1.msra.mxu0 0.0
        %1025 = vmatprep.subr.mxu0 0.0
        %1026 = vmatpush1.msra.mxu0 0.0
        %1027 = vmatprep.subr.mxu0 0.0
        %1028 = vmatpush1.msra.mxu0 0.0
        %1029 = vmatprep.subr.mxu0 0.0
        %1030 = vmatpush1.msra.mxu0 0.0
        %1031 = vmatprep.subr.mxu0 0.0
        %1032 = vmatpush1.msra.mxu0 0.0
        %1033 = vmatprep.subr.mxu0 0.0
        %1034 = vmatpush1.msra.mxu0 0.0
        %1035 = vmatprep.subr.mxu0 0.0
        %1036 = vmatpush1.msra.mxu0 0.0
        %1037 = vmatprep.subr.mxu0 0.0
        %1038 = vmatpush1.msra.mxu0 0.0
        %1039 = vmatprep.subr.mxu0 0.0
        %1040 = vmatpush1.msra.mxu0 0.0
        %1041 = vmatprep.subr.mxu0 0.0
        %1042 = vmatpush1.msra.mxu0 0.0
        %1043 = vmatprep.subr.mxu0 0.0
        %1044 = vmatpush1.msra.mxu0 0.0
        %1045 = vmatprep.subr.mxu0 0.0
        %1046 = vmatpush1.msra.mxu0 0.0
        %1047 = vmatprep.subr.mxu0 0.0
        %1048 = vmatpush1.msra.mxu0 0.0
        %1049 = vmatprep.subr.mxu0 0.0
        %1050 = vmatpush1.msra.mxu0 0.0
        %1051 = vmatprep.subr.mxu0 0.0
        %1052 = vmatpush1.msra.mxu0 0.0
        %1053 = vmatprep.subr.mxu0 0.0
        %1054 = vmatpush1.msra.mxu0 0.0
        %1055 = vmatprep.subr.mxu0 0.0
        %1056 = vmatpush1.msra.mxu0 0.0
        %1057 = vmatprep.subr.mxu0 0.0
        %1058 = vmatpush1.msra.mxu0 0.0
        %1059 = vmatprep.subr.mxu0 0.0
        %1060 = vmatpush1.msra.mxu0 0.0
        %1061 = vmatprep.subr.mxu0 0.0
        %1062 = vmatpush1.msra.mxu0 0.0
        %1063 = vmatprep.subr.mxu0 0.0
        %1064 = vmatpush1.msra.mxu0 0.0
        %1065 = vmatprep.subr.mxu0 0.0
        %1066 = vmatpush1.msra.mxu0 0.0
        %1067 = vmatprep.subr.mxu0 0.0
        %1068 = vmatpush1.msra.mxu0 0.0
        %1069 = vmatprep.subr.mxu0 0.0
        %1070 = vmatpush1.msra.mxu0 0.0
        %1071 = vmatprep.subr.mxu0 0.0
        %1072 = vmatpush1.msra.mxu0 0.0
        %1073 = vmatprep.subr.mxu0 0.0
        %1074 = vmatpush1.msra.mxu0 0.0
        %1075 = vmatprep.subr.mxu0 0.0
        %1076 = vmatpush1.msra.mxu0 0.0
        %1077 = vmatprep.mubr.f32.mxu0 0.0
        %1078 = vmatmul.mubr.f32.gmra.mrb[0].mxu0 %v1011
        %v1079 = vpop.f32.mrb[0].mxu0
        %v1080 = vadd.f32 0.0, %v1079
        %v1081 = vpop.f32.mrb[0].mxu0
        %1082 = vdwg.mxu0
        %1084 = vrot.lane.b32.xlu0 %v1080, 24
        %v1085 = vpop.permute.xlu0 %1084
        %vm1087 = vcmask 261312
        %1088 = vst.msk [vmem:[#allocation3] sm:$0xff] %vm1087, %v1085
        %v1089 = vld [vmem:[#allocation3] sm:$0xff]
        %v1090 = vld [vmem:[#allocation10] sm:$0xff]
        %v1091 = vld [vmem:[#allocation10 + $0x8] sm:$0xff]
        %v1092 = vld [vmem:[#allocation10 + $0x10] sm:$0xff]
        %v1093 = vld [vmem:[#allocation10 + $0x18] sm:$0xff]
        %v1094 = vld [vmem:[#allocation12] sm:$0x1]
        %v1096 = vlaneseq
        %v1097 = vshrl.u32 %v1096, 7
        %v1098 = vsub.s32 0, %v1097
        %v1099 = vrot.slane %v1094, %v1098
        %v1102 = vsel %vm313, %v1089, 0
        %1104 = vmatprep.subr.mxu0 0.0
        %1105 = vmatpush1.msra.mxu0 %v1090
        %1106 = vmatprep.subr.mxu0 0.0
        %1107 = vmatpush1.msra.mxu0 %v1091
        %1108 = vmatprep.subr.mxu0 0.0
        %1109 = vmatpush1.msra.mxu0 %v1092
        %1110 = vmatprep.subr.mxu0 0.0
        %1111 = vmatpush1.msra.mxu0 %v1093
        %1112 = vmatprep.subr.mxu0 0.0
        %1113 = vmatpush1.msra.mxu0 0.0
        %1114 = vmatprep.subr.mxu0 0.0
        %1115 = vmatpush1.msra.mxu0 0.0
        %1116 = vmatprep.subr.mxu0 0.0
        %1117 = vmatpush1.msra.mxu0 0.0
        %1118 = vmatprep.subr.mxu0 0.0
        %1119 = vmatpush1.msra.mxu0 0.0
        %1120 = vmatprep.subr.mxu0 0.0
        %1121 = vmatpush1.msra.mxu0 0.0
        %1122 = vmatprep.subr.mxu0 0.0
        %1123 = vmatpush1.msra.mxu0 0.0
        %1124 = vmatprep.subr.mxu0 0.0
        %1125 = vmatpush1.msra.mxu0 0.0
        %1126 = vmatprep.subr.mxu0 0.0
        %1127 = vmatpush1.msra.mxu0 0.0
        %1128 = vmatprep.subr.mxu0 0.0
        %1129 = vmatpush1.msra.mxu0 0.0
        %1130 = vmatprep.subr.mxu0 0.0
        %1131 = vmatpush1.msra.mxu0 0.0
        %1132 = vmatprep.subr.mxu0 0.0
        %1133 = vmatpush1.msra.mxu0 0.0
        %1134 = vmatprep.subr.mxu0 0.0
        %1135 = vmatpush1.msra.mxu0 0.0
        %1136 = vmatprep.subr.mxu0 0.0
        %1137 = vmatpush1.msra.mxu0 0.0
        %1138 = vmatprep.subr.mxu0 0.0
        %1139 = vmatpush1.msra.mxu0 0.0
        %1140 = vmatprep.subr.mxu0 0.0
        %1141 = vmatpush1.msra.mxu0 0.0
        %1142 = vmatprep.subr.mxu0 0.0
        %1143 = vmatpush1.msra.mxu0 0.0
        %1144 = vmatprep.subr.mxu0 0.0
        %1145 = vmatpush1.msra.mxu0 0.0
        %1146 = vmatprep.subr.mxu0 0.0
        %1147 = vmatpush1.msra.mxu0 0.0
        %1148 = vmatprep.subr.mxu0 0.0
        %1149 = vmatpush1.msra.mxu0 0.0
        %1150 = vmatprep.subr.mxu0 0.0
        %1151 = vmatpush1.msra.mxu0 0.0
        %1152 = vmatprep.subr.mxu0 0.0
        %1153 = vmatpush1.msra.mxu0 0.0
        %1154 = vmatprep.subr.mxu0 0.0
        %1155 = vmatpush1.msra.mxu0 0.0
        %1156 = vmatprep.subr.mxu0 0.0
        %1157 = vmatpush1.msra.mxu0 0.0
        %1158 = vmatprep.subr.mxu0 0.0
        %1159 = vmatpush1.msra.mxu0 0.0
        %1160 = vmatprep.subr.mxu0 0.0
        %1161 = vmatpush1.msra.mxu0 0.0
        %1162 = vmatprep.subr.mxu0 0.0
        %1163 = vmatpush1.msra.mxu0 0.0
        %1164 = vmatprep.subr.mxu0 0.0
        %1165 = vmatpush1.msra.mxu0 0.0
        %1166 = vmatprep.subr.mxu0 0.0
        %1167 = vmatpush1.msra.mxu0 0.0
        %1168 = vmatprep.mubr.f32.mxu0 0.0
        %1169 = vmatmul.mubr.f32.gmra.mrb[0].mxu0 %v1102
        %v1170 = vpop.f32.mrb[0].mxu0
        %v1171 = vadd.f32 %v1099, %v1170
        %v1172 = vpop.f32.mrb[0].mxu0
        %1173 = vdwg.mxu0
        %1174 = vst.msk [vmem:[%s307] sm:$0xff] %vm313, %v1171
        %s1175 = sand.u32 %s156, 1
        %s1176 = scalar_lea.sflag [#allocation6], %s1175
        %s1177 = sand.u32 %s156, 1
        %s1178 = smul.addr %s1177, 8
        %s1179 = scalar_lea.vmem [#allocation13], %s1178
        // Predicated region
        $region61: #{tpu_custom_call.1} parent=39 // pred_check
          %p1180 = pneg %p166
        $region62: #{tpu_custom_call.1} parent=39 // pred_check_branch
          %1182 = sbr.rel (%p1180) target = $region64
        $region63: #{tpu_custom_call.1} parent=39 // pred_region
          %s1184 = ssub.s32 128, 128
          %1185 = vsyncadd %s1176, %s1184
          %s1186 = sadd.s32 %s29, %s28
          %s1187 = smul.addr %s1186, 128
          %s1188 = scalar_lea.hbm %s5, %s1187
          %s1190 = sshll.u32 %s1179, 4
          %s1191 = int_to_ptr.vmem [resolvable:$true] %s1190
          %1193 = dma.vmem_to_hbm [thread:$0]  %s1191, 128, %s1188, %s1176
        $region64: #{tpu_custom_call.1} parent=39 // pred_fallthru
          _
      $region40: #{tpu_custom_call.1} parent=5 // pred_fallthru
        _
      %p1194 = scmp.le.s32.totalorder 2, %s19
      // Predicated region
      $region65: #{tpu_custom_call.1} parent=5 // pred_check
        %p1195 = pneg %p1194
      $region66: #{tpu_custom_call.1} parent=5 // pred_check_branch
        %1197 = sbr.rel (%p1195) target = $region68
      $region67: #{tpu_custom_call.1} parent=5 // pred_region
        %s1198 = ssub.s32 %s19, 2
        // Predicated region
        $region69: #{tpu_custom_call.1} parent=67 // pred_check
          %p1199 = pneg %p172
        $region70: #{tpu_custom_call.1} parent=67 // pred_check_branch
          %1201 = sbr.rel (%p1199) target = $region72
        $region71: #{tpu_custom_call.1} parent=67 // pred_region
          %s1202 = sand.u32 %s157, 1
          %s1203 = scalar_lea.sflag [#allocation6], %s1202
          %s1204 = sand.u32 %s157, 1
          %s1205 = smul.addr %s1204, 8
          %s1206 = scalar_lea.vmem [#allocation13], %s1205
          %1207 = dma.done %s1203, 128
        $region72: #{tpu_custom_call.1} parent=67 // pred_fallthru
          _
      $region68: #{tpu_custom_call.1} parent=5 // pred_fallthru
        _
    $region6: #{tpu_custom_call.1} parent=1 // loop_footer
      %s23 = sadd.s32 1, %s19
    $region7: #{tpu_custom_call.1} parent=1 // loop_footer_branch
      %18 = sbr.rel target = $region3
    $region8: #{tpu_custom_call.1} parent=1 // loop_exit
      _
    %1208 = vsyncpa [#allocation5], 1
    %s1209 = scalar_lea.sflag [#allocation5], 1
    %1210 = vsyncpa %s1209, 1
    %1211 = vsyncpa [#allocation8], 1
    %1212 = vsyncpa [#allocation11], 1
    %1213 = vsyncpa [#allocation6], 1
    %s1214 = scalar_lea.sflag [#allocation6], 1
    %1215 = vsyncpa %s1214, 1

</llo_original>
